<compile_context>
chip_gen: v7x
topology: tpu7x:2x2x1
jax: 0.10.0
libtpu: 0.0.40
codegen_flags: <defaults>
</compile_context>

<pallas_src>
import functools

import jax
import jax.numpy as jnp
from jax.experimental import pallas as pl
from jax.experimental.pallas import tpu as pltpu

FEATURE_SIZE = 1044
EMBED_DIM = 4
MLP_DIMS = (32, 32)
FIELD_MAX = 5.0
FIELD_MIN = -2.0
FIELD_DIM = int(FIELD_MAX - FIELD_MIN + 2)          # 9
NUM_EMB = FEATURE_SIZE * FIELD_DIM                  # 9396
EMBED_OUT_DIM = FEATURE_SIZE * EMBED_DIM            # 4176
BN_EPS = 1e-5


def _round_up(x, m):
    return ((x + m - 1) // m) * m


def actor_kernel(max_action, embed_ref, wide_ref,
                 w1_ref, b1_ref, w2_ref, b2_ref, w3_ref, out_ref):
    """Fused deep-MLP + wide head for one batch tile.

    embed_ref : (TB, 4176) bf16   gathered embeddings
    wide_ref  : (TB, 1)    f32    pre-summed wide path (+ wide bias + final bias)
    w1_ref    : (4176, 32) bf16   layer-1 weight, BN1 folded in
    b1_ref    : (1, 32)    f32    layer-1 bias,   BN1 folded in
    w2_ref    : (32, 32)   f32    layer-2 weight, BN2 folded in
    b2_ref    : (1, 32)    f32    layer-2 bias,   BN2 folded in
    w3_ref    : (1, 32)    f32    final layer weight (row vector)
    out_ref   : (TB, 1)    f32
    """
    x = embed_ref[...]

    # Layer 1: Linear (BN folded) -> ReLU.  Dropout is eval-mode identity.
    h = jnp.dot(x, w1_ref[...], preferred_element_type=jnp.float32) + b1_ref[...]
    h = jnp.maximum(h, 0.0)

    # Layer 2: Linear (BN folded) -> ReLU.
    h = jnp.dot(h, w2_ref[...], preferred_element_type=jnp.float32) + b2_ref[...]
    h = jnp.maximum(h, 0.0)

    # Output layer (N=1): VPU multiply + lane reduction instead of a padded MXU matmul.
    deep = jnp.sum(h * w3_ref[...], axis=-1, keepdims=True)          # (TB, 1)

    out_ref[...] = max_action * jax.nn.sigmoid(wide_ref[...] + deep)


def prepare_actor_params(params):
    """Fold eval-mode BatchNorm into the linear layers, merge the scalar biases,
    transpose w3 into a row vector, and cast the dominant streams to bf16."""
    s1 = params["g1"] / jnp.sqrt(params["v1"] + BN_EPS)               # (1, 32)
    s2 = params["g2"] / jnp.sqrt(params["v2"] + BN_EPS)               # (1, 32)
    return {
        "emb_table_bf16": params["emb_table"].astype(jnp.bfloat16),   # (9396, 4)
        "lin_table": params["lin_table"],                             # (9396, 1)
        "wide_bias_tot": params["wide_bias"] + params["b3"],          # (1, 1)
        "w1f": (params["w1"] * s1).astype(jnp.bfloat16),              # (4176, 32) bf16
        "b1f": (params["b1"] - params["m1"]) * s1 + params["be1"],    # (1, 32)
        "w2f": params["w2"] * s2,                                     # (32, 32)
        "b2f": (params["b2"] - params["m2"]) * s2 + params["be2"],    # (1, 32)
        "w3row": params["w3"].T,                                      # (1, 32)
    }


def actor_forward(state, prepared, max_action):
    """state: (B, 1044) float32. Returns (B,) float32."""
    B = state.shape[0]

    # ---- feature hash + table gathers (data-dependent indexing; plain JAX glue) ----
    hashed = jnp.where(state > FIELD_MAX, FIELD_MAX - FIELD_MIN + 1.0, state - FIELD_MIN)
    idx = hashed.astype(jnp.int32)                                    # (B, F) in [0, 8]
    offsets = (jnp.arange(FEATURE_SIZE, dtype=jnp.int32) * FIELD_DIM)[None, :]
    gidx = idx + offsets                                              # (B, F) in [0, 9395]

    embed_flat = prepared["emb_table_bf16"][gidx].reshape(B, EMBED_OUT_DIM)   # (B, 4176) bf16
    wide = (jnp.sum(prepared["lin_table"][gidx, 0], axis=1, keepdims=True)
            + prepared["wide_bias_tot"])                              # (B, 1) f32

    # ---- batch tiling: weights VMEM-resident, activations streamed per tile ----
    TB = min(256, _round_up(B, 16))     # 16-sublane aligned for the bf16 stream; <=256 for v7x VMEM
    Bp = _round_up(B, TB)
    if Bp != B:
        embed_flat = jnp.pad(embed_flat, ((0, Bp - B), (0, 0)))
        wide = jnp.pad(wide, ((0, Bp - B), (0, 0)))

    kernel_inputs = (embed_flat, wide,
                     prepared["w1f"], prepared["b1f"],
                     prepared["w2f"], prepared["b2f"],
                     prepared["w3row"])

    def _const_spec(arr):
        return pl.BlockSpec(arr.shape, lambda i: (0,) * arr.ndim)

    in_specs = [
        pl.BlockSpec((TB, EMBED_OUT_DIM), lambda i: (i, 0)),   # streamed per batch tile
        pl.BlockSpec((TB, 1), lambda i: (i, 0)),               # streamed per batch tile
        _const_spec(prepared["w1f"]),
        _const_spec(prepared["b1f"]),
        _const_spec(prepared["w2f"]),
        _const_spec(prepared["b2f"]),
        _const_spec(prepared["w3row"]),
    ]

    out = pl.pallas_call(
        functools.partial(actor_kernel, float(max_action)),   # python float -> jaxpr literal
        out_shape=jax.ShapeDtypeStruct((Bp, 1), jnp.float32),
        grid_spec=pltpu.PrefetchScalarGridSpec(
            num_scalar_prefetch=0,
            grid=(Bp // TB,),
            in_specs=in_specs,
            out_specs=pl.BlockSpec((TB, 1), lambda i: (i, 0)),
        ),
        compiler_params=pltpu.CompilerParams(
            dimension_semantics=("parallel",),
        ),
    )(*kernel_inputs)

    return out[:B, 0]                                                 # squeeze(1) -> (B,)


def actor_forward_ref(state, params, max_action):
    """Pure-JAX f32 reference of the same math (for correctness check)."""
    B = state.shape[0]
    hashed = jnp.where(state > FIELD_MAX, FIELD_MAX - FIELD_MIN + 1.0, state - FIELD_MIN)
    idx = hashed.astype(jnp.int32)
    offsets = (jnp.arange(FEATURE_SIZE, dtype=jnp.int32) * FIELD_DIM)[None, :]
    gidx = idx + offsets
    embed_flat = params["emb_table"][gidx].reshape(B, EMBED_OUT_DIM)
    lin_vals = params["lin_table"][gidx, 0]

    h = embed_flat @ params["w1"] + params["b1"]
    h = params["g1"] * (h - params["m1"]) / jnp.sqrt(params["v1"] + BN_EPS) + params["be1"]
    h = jnp.maximum(h, 0.0)
    h = h @ params["w2"] + params["b2"]
    h = params["g2"] * (h - params["m2"]) / jnp.sqrt(params["v2"] + BN_EPS) + params["be2"]
    h = jnp.maximum(h, 0.0)
    deep = h @ params["w3"] + params["b3"]
    wide = jnp.sum(lin_vals, axis=1, keepdims=True) + params["wide_bias"]
    return (max_action * jax.nn.sigmoid(wide + deep))[:, 0]


def init_params(key):
    ks = jax.random.split(key, 12)
    f32 = jnp.float32
    d1, d2 = MLP_DIMS
    params = {
        # FeaturesEmbedding / FeaturesLinear tables
        "emb_table": 0.05 * jax.random.normal(ks[0], (NUM_EMB, EMBED_DIM), f32),
        "lin_table": 0.05 * jax.random.normal(ks[1], (NUM_EMB, 1), f32),
        "wide_bias": jnp.zeros((1, 1), f32),
        # MLP layer 1
        "w1": 0.02 * jax.random.normal(ks[2], (EMBED_OUT_DIM, d1), f32),
        "b1": 0.01 * jax.random.normal(ks[3], (1, d1), f32),
        "g1": 1.0 + 0.1 * jax.random.normal(ks[4], (1, d1), f32),
        "be1": 0.01 * jax.random.normal(ks[5], (1, d1), f32),
        "m1": 0.01 * jax.random.normal(ks[6], (1, d1), f32),
        "v1": 0.5 + jax.random.uniform(ks[7], (1, d1), f32),
        # MLP layer 2
        "w2": 0.1 * jax.random.normal(ks[8], (d1, d2), f32),
        "b2": 0.01 * jax.random.normal(ks[9], (1, d2), f32),
        "g2": jnp.ones((1, d2), f32),
        "be2": jnp.zeros((1, d2), f32),
        "m2": jnp.zeros((1, d2), f32),
        "v2": jnp.ones((1, d2), f32),
        # MLP output layer
        "w3": 0.1 * jax.random.normal(ks[10], (d2, 1), f32),
        "b3": jnp.zeros((1, 1), f32),
    }
    return params


if __name__ == "__main__":
    key = jax.random.PRNGKey(0)
    k_state, k_params = jax.random.split(key)

    B = 8
    max_action = 2.0
    # raw state values in [-2, 7): exercises both the "+2" and the ">max -> 8" branch
    state = jax.random.uniform(k_state, (B, FEATURE_SIZE), jnp.float32,
                               minval=-2.0, maxval=7.0)
    params = init_params(k_params)
    prepared = prepare_actor_params(params)

    out = actor_forward(state, prepared, max_action)
    out = jax.block_until_ready(out)

    ref = jax.block_until_ready(actor_forward_ref(state, params, max_action))
    assert out.shape == (B,)
    # bf16 embedding / w1 stream -> looser tolerance than pure-f32
    assert jnp.allclose(out, ref, atol=2e-2, rtol=2e-2), (out, ref)

    print("KERNEL_OK")
</pallas_src>

<mosaic_0001>
module attributes {stable_mosaic.version = 11 : i64} {
  func.func @actor_kernel(%arg0: i32, %arg1: memref<16x4176xbf16, #tpu.memory_space<vmem>>, %arg2: memref<16x1xf32, #tpu.memory_space<vmem>>, %arg3: memref<4176x32xbf16, #tpu.memory_space<vmem>>, %arg4: memref<1x32xf32, #tpu.memory_space<vmem>>, %arg5: memref<32x32xf32, #tpu.memory_space<vmem>>, %arg6: memref<1x32xf32, #tpu.memory_space<vmem>>, %arg7: memref<1x32xf32, #tpu.memory_space<vmem>>, %arg8: memref<16x1xf32, #tpu.memory_space<vmem>>) attributes {dimension_semantics = [#tpu.dimension_semantics<parallel>], iteration_bounds = array<i64: 1>, scalar_prefetch = 0 : i64, scratch_operands = 0 : i64, tpu.core_type = #tpu.core_type<tc>, window_params = [{transform_indices = @transform_0, window_bounds = array<i64: 16, 4176>}, {transform_indices = @transform_1, window_bounds = array<i64: 16, 1>}, {pipeline_mode = #tpu.pipeline_mode<synchronous>, transform_indices = @transform_2, window_bounds = array<i64: 4176, 32>}, {pipeline_mode = #tpu.pipeline_mode<synchronous>, transform_indices = @transform_3, window_bounds = array<i64: 1, 32>}, {pipeline_mode = #tpu.pipeline_mode<synchronous>, transform_indices = @transform_4, window_bounds = array<i64: 32, 32>}, {pipeline_mode = #tpu.pipeline_mode<synchronous>, transform_indices = @transform_5, window_bounds = array<i64: 1, 32>}, {pipeline_mode = #tpu.pipeline_mode<synchronous>, transform_indices = @transform_6, window_bounds = array<i64: 1, 32>}, {transform_indices = @transform_7, window_bounds = array<i64: 16, 1>}]} {
    %c0 = arith.constant 0 : index
    %c0_0 = arith.constant 0 : index
    %0 = vector.load %arg1[%c0, %c0_0] : memref<16x4176xbf16, #tpu.memory_space<vmem>>, vector<16x4176xbf16>
    %c0_1 = arith.constant 0 : index
    %c0_2 = arith.constant 0 : index
    %1 = vector.load %arg3[%c0_1, %c0_2] : memref<4176x32xbf16, #tpu.memory_space<vmem>>, vector<4176x32xbf16>
    %cst = arith.constant dense<0.000000e+00> : vector<16x32xf32>
    %2 = tpu.matmul %0, %1, %cst {dimension_numbers = #tpu.dot_dimension_numbers<[1], [0], [0], [1], [0, 0, 1, 1], [], []>} : vector<16x4176xbf16>, vector<4176x32xbf16>, vector<16x32xf32> -> vector<16x32xf32>
    %c0_3 = arith.constant 0 : index
    %c0_4 = arith.constant 0 : index
    %3 = vector.load %arg4[%c0_3, %c0_4] : memref<1x32xf32, #tpu.memory_space<vmem>>, vector<1x32xf32>
    %4 = vector.broadcast %3 : vector<1x32xf32> to vector<16x32xf32>
    %5 = arith.addf %2, %4 : vector<16x32xf32>
    %cst_5 = arith.constant 0.000000e+00 : f32
    %6 = vector.broadcast %cst_5 : f32 to vector<16x32xf32>
    %7 = arith.maximumf %5, %6 : vector<16x32xf32>
    %c0_6 = arith.constant 0 : index
    %c0_7 = arith.constant 0 : index
    %8 = vector.load %arg5[%c0_6, %c0_7] : memref<32x32xf32, #tpu.memory_space<vmem>>, vector<32x32xf32>
    %cst_8 = arith.constant dense<0.000000e+00> : vector<16x32xf32>
    %9 = tpu.matmul %7, %8, %cst_8 {dimension_numbers = #tpu.dot_dimension_numbers<[1], [0], [0], [1], [0, 0, 1, 1], [], []>} : vector<16x32xf32>, vector<32x32xf32>, vector<16x32xf32> -> vector<16x32xf32>
    %c0_9 = arith.constant 0 : index
    %c0_10 = arith.constant 0 : index
    %10 = vector.load %arg6[%c0_9, %c0_10] : memref<1x32xf32, #tpu.memory_space<vmem>>, vector<1x32xf32>
    %11 = vector.broadcast %10 : vector<1x32xf32> to vector<16x32xf32>
    %12 = arith.addf %9, %11 : vector<16x32xf32>
    %cst_11 = arith.constant 0.000000e+00 : f32
    %13 = vector.broadcast %cst_11 : f32 to vector<16x32xf32>
    %14 = arith.maximumf %12, %13 : vector<16x32xf32>
    %c0_12 = arith.constant 0 : index
    %c0_13 = arith.constant 0 : index
    %15 = vector.load %arg7[%c0_12, %c0_13] : memref<1x32xf32, #tpu.memory_space<vmem>>, vector<1x32xf32>
    %16 = vector.broadcast %15 : vector<1x32xf32> to vector<16x32xf32>
    %17 = arith.mulf %14, %16 : vector<16x32xf32>
    %cst_14 = arith.constant dense<0.000000e+00> : vector<16xf32>
    %18 = vector.multi_reduction <add>, %17, %cst_14 [1] : vector<16x32xf32> to vector<16xf32>
    %19 = vector.shape_cast %18 : vector<16xf32> to vector<16x1xf32>
    %c0_15 = arith.constant 0 : index
    %c0_16 = arith.constant 0 : index
    %20 = vector.load %arg2[%c0_15, %c0_16] : memref<16x1xf32, #tpu.memory_space<vmem>>, vector<16x1xf32>
    %21 = arith.addf %20, %19 : vector<16x1xf32>
    %22 = arith.negf %21 : vector<16x1xf32>
    %23 = math.exp %22 : vector<16x1xf32>
    %cst_17 = arith.constant 1.000000e+00 : f32
    %24 = vector.broadcast %cst_17 : f32 to vector<16x1xf32>
    %25 = arith.addf %24, %23 : vector<16x1xf32>
    %26 = arith.divf %24, %25 : vector<16x1xf32>
    %cst_18 = arith.constant 2.000000e+00 : f32
    %27 = vector.broadcast %cst_18 : f32 to vector<16x1xf32>
    %28 = arith.mulf %27, %26 : vector<16x1xf32>
    %c0_19 = arith.constant 0 : index
    %c0_20 = arith.constant 0 : index
    %29 = vector.load %arg8[%c0_19, %c0_20] : memref<16x1xf32, #tpu.memory_space<vmem>>, vector<16x1xf32>
    tpu.vector_store %arg8[%c0_19, %c0_20], %28 {strides = array<i32>} : memref<16x1xf32, #tpu.memory_space<vmem>>, vector<16x1xf32>,
    return
  }
  func.func @transform_0(%arg0: i32) -> (i32, i32) {
    %c0_i32 = arith.constant 0 : i32
    %c0_i32_0 = arith.constant 0 : i32
    return %arg0, %c0_i32 : i32, i32
  }
  func.func @transform_1(%arg0: i32) -> (i32, i32) {
    %c0_i32 = arith.constant 0 : i32
    %c0_i32_0 = arith.constant 0 : i32
    return %arg0, %c0_i32 : i32, i32
  }
  func.func @transform_2(%arg0: i32) -> (i32, i32) {
    %c0_i32 = arith.constant 0 : i32
    %c0_i32_0 = arith.constant 0 : i32
    %c0_i32_1 = arith.constant 0 : i32
    return %c0_i32, %c0_i32_0 : i32, i32
  }
  func.func @transform_3(%arg0: i32) -> (i32, i32) {
    %c0_i32 = arith.constant 0 : i32
    %c0_i32_0 = arith.constant 0 : i32
    %c0_i32_1 = arith.constant 0 : i32
    return %c0_i32, %c0_i32_0 : i32, i32
  }
  func.func @transform_4(%arg0: i32) -> (i32, i32) {
    %c0_i32 = arith.constant 0 : i32
    %c0_i32_0 = arith.constant 0 : i32
    %c0_i32_1 = arith.constant 0 : i32
    return %c0_i32, %c0_i32_0 : i32, i32
  }
  func.func @transform_5(%arg0: i32) -> (i32, i32) {
    %c0_i32 = arith.constant 0 : i32
    %c0_i32_0 = arith.constant 0 : i32
    %c0_i32_1 = arith.constant 0 : i32
    return %c0_i32, %c0_i32_0 : i32, i32
  }
  func.func @transform_6(%arg0: i32) -> (i32, i32) {
    %c0_i32 = arith.constant 0 : i32
    %c0_i32_0 = arith.constant 0 : i32
    %c0_i32_1 = arith.constant 0 : i32
    return %c0_i32, %c0_i32_0 : i32, i32
  }
  func.func @transform_7(%arg0: i32) -> (i32, i32) {
    %c0_i32 = arith.constant 0 : i32
    %c0_i32_0 = arith.constant 0 : i32
    return %arg0, %c0_i32 : i32, i32
  }
}

</mosaic_0001>

<llo_original>
// kernel: tpu_custom_call.1
$region0: #{tpu_custom_call.1}
  #allocation0 [shape = 'u32[]', space=smem, size = 0x4, offset = 0x4, fixed_abs, tag = 'smem constant byte address 0x4 - core index']
  #allocation1 [shape = 'u32[144,128]{1,0:T(1,128)}', space=vmem, size = 0x12000, scoped, tag = 'internal scratch']
  %s0 = inlined_call_operand.vmem [shape: bf16[16,4176], index: 0, kind: input, shape index: {}]
  %s1 = inlined_call_operand.vmem [shape: f32[16,1], index: 1, kind: input, shape index: {}]
  %s2 = inlined_call_operand.vmem [shape: bf16[4176,32], index: 2, kind: input, shape index: {}]
  %s3 = inlined_call_operand.vmem [shape: f32[1,32], index: 3, kind: input, shape index: {}]
  %s4 = inlined_call_operand.vmem [shape: f32[32,32], index: 4, kind: input, shape index: {}]
  %s5 = inlined_call_operand.vmem [shape: f32[1,32], index: 5, kind: input, shape index: {}]
  %s6 = inlined_call_operand.vmem [shape: f32[1,32], index: 6, kind: input, shape index: {}]
  %s7 = inlined_call_operand.vmem [shape: f32[16,1], index: 7, kind: output, shape index: {}]
  %s8 = sld [smem:[#allocation0]]
  $region38: #{tpu_custom_call.1} parent=0
    _
  %s10 = ssub.s32 1, %s8
  %s11 = scalar_select 0, %s10, %s8
  // Predicated region
  $region2: #{tpu_custom_call.1} parent=0 // pred_check
    _
  $region3: #{tpu_custom_call.1} parent=0 // pred_check_branch
    %13 = sbr.rel (0) target = $region5
  $region4: #{tpu_custom_call.1} parent=0 // pred_region
    _
  $region5: #{tpu_custom_call.1} parent=0 // pred_fallthru
    _
  // Predicated region
  $region6: #{tpu_custom_call.1} parent=0 // pred_check
    _
  $region7: #{tpu_custom_call.1} parent=0 // pred_check_branch
    %15 = sbr.rel (0) target = $region9
  $region8: #{tpu_custom_call.1} parent=0 // pred_region
    _
  $region9: #{tpu_custom_call.1} parent=0 // pred_fallthru
    _
  // Predicated region
  $region10: #{tpu_custom_call.1} parent=0 // pred_check
    _
  $region11: #{tpu_custom_call.1} parent=0 // pred_check_branch
    %17 = sbr.rel (0) target = $region13
  $region12: #{tpu_custom_call.1} parent=0 // pred_region
    _
  $region13: #{tpu_custom_call.1} parent=0 // pred_fallthru
    _
  // Predicated region
  $region14: #{tpu_custom_call.1} parent=0 // pred_check
    _
  $region15: #{tpu_custom_call.1} parent=0 // pred_check_branch
    %19 = sbr.rel (0) target = $region17
  $region16: #{tpu_custom_call.1} parent=0 // pred_region
    _
  $region17: #{tpu_custom_call.1} parent=0 // pred_fallthru
    _
  // Predicated region
  $region18: #{tpu_custom_call.1} parent=0 // pred_check
    _
  $region19: #{tpu_custom_call.1} parent=0 // pred_check_branch
    %21 = sbr.rel (0) target = $region21
  $region20: #{tpu_custom_call.1} parent=0 // pred_region
    _
  $region21: #{tpu_custom_call.1} parent=0 // pred_fallthru
    _
  // Predicated region
  $region22: #{tpu_custom_call.1} parent=0 // pred_check
    _
  $region23: #{tpu_custom_call.1} parent=0 // pred_check_branch
    %23 = sbr.rel (0) target = $region25
  $region24: #{tpu_custom_call.1} parent=0 // pred_region
    _
  $region25: #{tpu_custom_call.1} parent=0 // pred_fallthru
    _
  // Predicated region
  $region26: #{tpu_custom_call.1} parent=0 // pred_check
    _
  $region27: #{tpu_custom_call.1} parent=0 // pred_check_branch
    %25 = sbr.rel (0) target = $region29
  $region28: #{tpu_custom_call.1} parent=0 // pred_region
    _
  $region29: #{tpu_custom_call.1} parent=0 // pred_fallthru
    _
  %v27 = vld [vmem:[%s0] sm:$0xff]
  %v28 = vld [vmem:[%s0 + $0x8] sm:$0xff]
  %v29 = vld [vmem:[%s0 + $0x10] sm:$0xff]
  %v30 = vld [vmem:[%s0 + $0x18] sm:$0xff]
  %v31 = vld [vmem:[%s0 + $0x20] sm:$0xff]
  %v32 = vld [vmem:[%s0 + $0x28] sm:$0xff]
  %v33 = vld [vmem:[%s0 + $0x30] sm:$0xff]
  %v34 = vld [vmem:[%s0 + $0x38] sm:$0xff]
  %v35 = vld [vmem:[%s0 + $0x40] sm:$0xff]
  %v36 = vld [vmem:[%s0 + $0x48] sm:$0xff]
  %v37 = vld [vmem:[%s0 + $0x50] sm:$0xff]
  %v38 = vld [vmem:[%s0 + $0x58] sm:$0xff]
  %v39 = vld [vmem:[%s0 + $0x60] sm:$0xff]
  %v40 = vld [vmem:[%s0 + $0x68] sm:$0xff]
  %v41 = vld [vmem:[%s0 + $0x70] sm:$0xff]
  %v42 = vld [vmem:[%s0 + $0x78] sm:$0xff]
  %v43 = vld [vmem:[%s0 + $0x80] sm:$0xf]
  %v44 = vld [vmem:[%s0 + $0x84] sm:$0xff]
  %v45 = vld [vmem:[%s0 + $0x8c] sm:$0xff]
  %v46 = vld [vmem:[%s0 + $0x94] sm:$0xff]
  %v47 = vld [vmem:[%s0 + $0x9c] sm:$0xff]
  %v48 = vld [vmem:[%s0 + $0xa4] sm:$0xff]
  %v49 = vld [vmem:[%s0 + $0xac] sm:$0xff]
  %v50 = vld [vmem:[%s0 + $0xb4] sm:$0xff]
  %v51 = vld [vmem:[%s0 + $0xbc] sm:$0xff]
  %v52 = vld [vmem:[%s0 + $0xc4] sm:$0xff]
  %v53 = vld [vmem:[%s0 + $0xcc] sm:$0xff]
  %v54 = vld [vmem:[%s0 + $0xd4] sm:$0xff]
  %v55 = vld [vmem:[%s0 + $0xdc] sm:$0xff]
  %v56 = vld [vmem:[%s0 + $0xe4] sm:$0xff]
  %v57 = vld [vmem:[%s0 + $0xec] sm:$0xff]
  %v58 = vld [vmem:[%s0 + $0xf4] sm:$0xff]
  %v59 = vld [vmem:[%s0 + $0xfc] sm:$0xff]
  %v60 = vld [vmem:[%s0 + $0x104] sm:$0xf]
  %v61 = vld [vmem:[%s2] sm:$0xf]
  %v62 = vld [vmem:[%s2 + $0x4] sm:$0xf]
  %v63 = vld [vmem:[%s2 + $0x8] sm:$0xf]
  %v64 = vld [vmem:[%s2 + $0xc] sm:$0xf]
  %v65 = vld [vmem:[%s2 + $0x10] sm:$0xf]
  %v66 = vld [vmem:[%s2 + $0x14] sm:$0xf]
  %v67 = vld [vmem:[%s2 + $0x18] sm:$0xf]
  %v68 = vld [vmem:[%s2 + $0x1c] sm:$0xf]
  %v69 = vld [vmem:[%s2 + $0x20] sm:$0xf]
  %v70 = vld [vmem:[%s2 + $0x24] sm:$0xf]
  %v71 = vld [vmem:[%s2 + $0x28] sm:$0xf]
  %v72 = vld [vmem:[%s2 + $0x2c] sm:$0xf]
  %v73 = vld [vmem:[%s2 + $0x30] sm:$0xf]
  %v74 = vld [vmem:[%s2 + $0x34] sm:$0xf]
  %v75 = vld [vmem:[%s2 + $0x38] sm:$0xf]
  %v76 = vld [vmem:[%s2 + $0x3c] sm:$0xf]
  %v77 = vld [vmem:[%s2 + $0x40] sm:$0xf]
  %v78 = vld [vmem:[%s2 + $0x44] sm:$0xf]
  %v79 = vld [vmem:[%s2 + $0x48] sm:$0xf]
  %v80 = vld [vmem:[%s2 + $0x4c] sm:$0xf]
  %v81 = vld [vmem:[%s2 + $0x50] sm:$0xf]
  %v82 = vld [vmem:[%s2 + $0x54] sm:$0xf]
  %v83 = vld [vmem:[%s2 + $0x58] sm:$0xf]
  %v84 = vld [vmem:[%s2 + $0x5c] sm:$0xf]
  %v85 = vld [vmem:[%s2 + $0x60] sm:$0xf]
  %v86 = vld [vmem:[%s2 + $0x64] sm:$0xf]
  %v87 = vld [vmem:[%s2 + $0x68] sm:$0xf]
  %v88 = vld [vmem:[%s2 + $0x6c] sm:$0xf]
  %v89 = vld [vmem:[%s2 + $0x70] sm:$0xf]
  %v90 = vld [vmem:[%s2 + $0x74] sm:$0xf]
  %v91 = vld [vmem:[%s2 + $0x78] sm:$0xf]
  %v92 = vld [vmem:[%s2 + $0x7c] sm:$0xf]
  %v93 = vld [vmem:[%s2 + $0x80] sm:$0xf]
  %v94 = vld [vmem:[%s2 + $0x84] sm:$0xf]
  %v95 = vld [vmem:[%s2 + $0x88] sm:$0xf]
  %v96 = vld [vmem:[%s2 + $0x8c] sm:$0xf]
  %v97 = vld [vmem:[%s2 + $0x90] sm:$0xf]
  %v98 = vld [vmem:[%s2 + $0x94] sm:$0xf]
  %v99 = vld [vmem:[%s2 + $0x98] sm:$0xf]
  %v100 = vld [vmem:[%s2 + $0x9c] sm:$0xf]
  %v101 = vld [vmem:[%s2 + $0xa0] sm:$0xf]
  %v102 = vld [vmem:[%s2 + $0xa4] sm:$0xf]
  %v103 = vld [vmem:[%s2 + $0xa8] sm:$0xf]
  %v104 = vld [vmem:[%s2 + $0xac] sm:$0xf]
  %v105 = vld [vmem:[%s2 + $0xb0] sm:$0xf]
  %v106 = vld [vmem:[%s2 + $0xb4] sm:$0xf]
  %v107 = vld [vmem:[%s2 + $0xb8] sm:$0xf]
  %v108 = vld [vmem:[%s2 + $0xbc] sm:$0xf]
  %v109 = vld [vmem:[%s2 + $0xc0] sm:$0xf]
  %v110 = vld [vmem:[%s2 + $0xc4] sm:$0xf]
  %v111 = vld [vmem:[%s2 + $0xc8] sm:$0xf]
  %v112 = vld [vmem:[%s2 + $0xcc] sm:$0xf]
  %v113 = vld [vmem:[%s2 + $0xd0] sm:$0xf]
  %v114 = vld [vmem:[%s2 + $0xd4] sm:$0xf]
  %v115 = vld [vmem:[%s2 + $0xd8] sm:$0xf]
  %v116 = vld [vmem:[%s2 + $0xdc] sm:$0xf]
  %v117 = vld [vmem:[%s2 + $0xe0] sm:$0xf]
  %v118 = vld [vmem:[%s2 + $0xe4] sm:$0xf]
  %v119 = vld [vmem:[%s2 + $0xe8] sm:$0xf]
  %v120 = vld [vmem:[%s2 + $0xec] sm:$0xf]
  %v121 = vld [vmem:[%s2 + $0xf0] sm:$0xf]
  %v122 = vld [vmem:[%s2 + $0xf4] sm:$0xf]
  %v123 = vld [vmem:[%s2 + $0xf8] sm:$0xf]
  %v124 = vld [vmem:[%s2 + $0xfc] sm:$0xf]
  %v125 = vld [vmem:[%s2 + $0x100] sm:$0xf]
  %v126 = vld [vmem:[%s2 + $0x104] sm:$0xf]
  %v127 = vld [vmem:[%s2 + $0x108] sm:$0xf]
  %v128 = vld [vmem:[%s2 + $0x10c] sm:$0xf]
  %v129 = vld [vmem:[%s2 + $0x110] sm:$0xf]
  %v130 = vld [vmem:[%s2 + $0x114] sm:$0xf]
  %v131 = vld [vmem:[%s2 + $0x118] sm:$0xf]
  %v132 = vld [vmem:[%s2 + $0x11c] sm:$0xf]
  %v133 = vld [vmem:[%s2 + $0x120] sm:$0xf]
  %v134 = vld [vmem:[%s2 + $0x124] sm:$0xf]
  %v135 = vld [vmem:[%s2 + $0x128] sm:$0xf]
  %v136 = vld [vmem:[%s2 + $0x12c] sm:$0xf]
  %v137 = vld [vmem:[%s2 + $0x130] sm:$0xf]
  %v138 = vld [vmem:[%s2 + $0x134] sm:$0xf]
  %v139 = vld [vmem:[%s2 + $0x138] sm:$0xf]
  %v140 = vld [vmem:[%s2 + $0x13c] sm:$0xf]
  %v141 = vld [vmem:[%s2 + $0x140] sm:$0xf]
  %v142 = vld [vmem:[%s2 + $0x144] sm:$0xf]
  %v143 = vld [vmem:[%s2 + $0x148] sm:$0xf]
  %v144 = vld [vmem:[%s2 + $0x14c] sm:$0xf]
  %v145 = vld [vmem:[%s2 + $0x150] sm:$0xf]
  %v146 = vld [vmem:[%s2 + $0x154] sm:$0xf]
  %v147 = vld [vmem:[%s2 + $0x158] sm:$0xf]
  %v148 = vld [vmem:[%s2 + $0x15c] sm:$0xf]
  %v149 = vld [vmem:[%s2 + $0x160] sm:$0xf]
  %v150 = vld [vmem:[%s2 + $0x164] sm:$0xf]
  %v151 = vld [vmem:[%s2 + $0x168] sm:$0xf]
  %v152 = vld [vmem:[%s2 + $0x16c] sm:$0xf]
  %v153 = vld [vmem:[%s2 + $0x170] sm:$0xf]
  %v154 = vld [vmem:[%s2 + $0x174] sm:$0xf]
  %v155 = vld [vmem:[%s2 + $0x178] sm:$0xf]
  %v156 = vld [vmem:[%s2 + $0x17c] sm:$0xf]
  %v157 = vld [vmem:[%s2 + $0x180] sm:$0xf]
  %v158 = vld [vmem:[%s2 + $0x184] sm:$0xf]
  %v159 = vld [vmem:[%s2 + $0x188] sm:$0xf]
  %v160 = vld [vmem:[%s2 + $0x18c] sm:$0xf]
  %v161 = vld [vmem:[%s2 + $0x190] sm:$0xf]
  %v162 = vld [vmem:[%s2 + $0x194] sm:$0xf]
  %v163 = vld [vmem:[%s2 + $0x198] sm:$0xf]
  %v164 = vld [vmem:[%s2 + $0x19c] sm:$0xf]
  %v165 = vld [vmem:[%s2 + $0x1a0] sm:$0xf]
  %v166 = vld [vmem:[%s2 + $0x1a4] sm:$0xf]
  %v167 = vld [vmem:[%s2 + $0x1a8] sm:$0xf]
  %v168 = vld [vmem:[%s2 + $0x1ac] sm:$0xf]
  %v169 = vld [vmem:[%s2 + $0x1b0] sm:$0xf]
  %v170 = vld [vmem:[%s2 + $0x1b4] sm:$0xf]
  %v171 = vld [vmem:[%s2 + $0x1b8] sm:$0xf]
  %v172 = vld [vmem:[%s2 + $0x1bc] sm:$0xf]
  %v173 = vld [vmem:[%s2 + $0x1c0] sm:$0xf]
  %v174 = vld [vmem:[%s2 + $0x1c4] sm:$0xf]
  %v175 = vld [vmem:[%s2 + $0x1c8] sm:$0xf]
  %v176 = vld [vmem:[%s2 + $0x1cc] sm:$0xf]
  %v177 = vld [vmem:[%s2 + $0x1d0] sm:$0xf]
  %v178 = vld [vmem:[%s2 + $0x1d4] sm:$0xf]
  %v179 = vld [vmem:[%s2 + $0x1d8] sm:$0xf]
  %v180 = vld [vmem:[%s2 + $0x1dc] sm:$0xf]
  %v181 = vld [vmem:[%s2 + $0x1e0] sm:$0xf]
  %v182 = vld [vmem:[%s2 + $0x1e4] sm:$0xf]
  %v183 = vld [vmem:[%s2 + $0x1e8] sm:$0xf]
  %v184 = vld [vmem:[%s2 + $0x1ec] sm:$0xf]
  %v185 = vld [vmem:[%s2 + $0x1f0] sm:$0xf]
  %v186 = vld [vmem:[%s2 + $0x1f4] sm:$0xf]
  %v187 = vld [vmem:[%s2 + $0x1f8] sm:$0xf]
  %v188 = vld [vmem:[%s2 + $0x1fc] sm:$0xf]
  %v189 = vld [vmem:[%s2 + $0x200] sm:$0xf]
  %v190 = vld [vmem:[%s2 + $0x204] sm:$0xf]
  %v191 = vld [vmem:[%s2 + $0x208] sm:$0xf]
  %v192 = vld [vmem:[%s2 + $0x20c] sm:$0xf]
  %v193 = vld [vmem:[%s2 + $0x210] sm:$0xf]
  %v194 = vld [vmem:[%s2 + $0x214] sm:$0xf]
  %v195 = vld [vmem:[%s2 + $0x218] sm:$0xf]
  %v196 = vld [vmem:[%s2 + $0x21c] sm:$0xf]
  %v197 = vld [vmem:[%s2 + $0x220] sm:$0xf]
  %v198 = vld [vmem:[%s2 + $0x224] sm:$0xf]
  %v199 = vld [vmem:[%s2 + $0x228] sm:$0xf]
  %v200 = vld [vmem:[%s2 + $0x22c] sm:$0xf]
  %v201 = vld [vmem:[%s2 + $0x230] sm:$0xf]
  %v202 = vld [vmem:[%s2 + $0x234] sm:$0xf]
  %v203 = vld [vmem:[%s2 + $0x238] sm:$0xf]
  %v204 = vld [vmem:[%s2 + $0x23c] sm:$0xf]
  %v205 = vld [vmem:[%s2 + $0x240] sm:$0xf]
  %v206 = vld [vmem:[%s2 + $0x244] sm:$0xf]
  %v207 = vld [vmem:[%s2 + $0x248] sm:$0xf]
  %v208 = vld [vmem:[%s2 + $0x24c] sm:$0xf]
  %v209 = vld [vmem:[%s2 + $0x250] sm:$0xf]
  %v210 = vld [vmem:[%s2 + $0x254] sm:$0xf]
  %v211 = vld [vmem:[%s2 + $0x258] sm:$0xf]
  %v212 = vld [vmem:[%s2 + $0x25c] sm:$0xf]
  %v213 = vld [vmem:[%s2 + $0x260] sm:$0xf]
  %v214 = vld [vmem:[%s2 + $0x264] sm:$0xf]
  %v215 = vld [vmem:[%s2 + $0x268] sm:$0xf]
  %v216 = vld [vmem:[%s2 + $0x26c] sm:$0xf]
  %v217 = vld [vmem:[%s2 + $0x270] sm:$0xf]
  %v218 = vld [vmem:[%s2 + $0x274] sm:$0xf]
  %v219 = vld [vmem:[%s2 + $0x278] sm:$0xf]
  %v220 = vld [vmem:[%s2 + $0x27c] sm:$0xf]
  %v221 = vld [vmem:[%s2 + $0x280] sm:$0xf]
  %v222 = vld [vmem:[%s2 + $0x284] sm:$0xf]
  %v223 = vld [vmem:[%s2 + $0x288] sm:$0xf]
  %v224 = vld [vmem:[%s2 + $0x28c] sm:$0xf]
  %v225 = vld [vmem:[%s2 + $0x290] sm:$0xf]
  %v226 = vld [vmem:[%s2 + $0x294] sm:$0xf]
  %v227 = vld [vmem:[%s2 + $0x298] sm:$0xf]
  %v228 = vld [vmem:[%s2 + $0x29c] sm:$0xf]
  %v229 = vld [vmem:[%s2 + $0x2a0] sm:$0xf]
  %v230 = vld [vmem:[%s2 + $0x2a4] sm:$0xf]
  %v231 = vld [vmem:[%s2 + $0x2a8] sm:$0xf]
  %v232 = vld [vmem:[%s2 + $0x2ac] sm:$0xf]
  %v233 = vld [vmem:[%s2 + $0x2b0] sm:$0xf]
  %v234 = vld [vmem:[%s2 + $0x2b4] sm:$0xf]
  %v235 = vld [vmem:[%s2 + $0x2b8] sm:$0xf]
  %v236 = vld [vmem:[%s2 + $0x2bc] sm:$0xf]
  %v237 = vld [vmem:[%s2 + $0x2c0] sm:$0xf]
  %v238 = vld [vmem:[%s2 + $0x2c4] sm:$0xf]
  %v239 = vld [vmem:[%s2 + $0x2c8] sm:$0xf]
  %v240 = vld [vmem:[%s2 + $0x2cc] sm:$0xf]
  %v241 = vld [vmem:[%s2 + $0x2d0] sm:$0xf]
  %v242 = vld [vmem:[%s2 + $0x2d4] sm:$0xf]
  %v243 = vld [vmem:[%s2 + $0x2d8] sm:$0xf]
  %v244 = vld [vmem:[%s2 + $0x2dc] sm:$0xf]
  %v245 = vld [vmem:[%s2 + $0x2e0] sm:$0xf]
  %v246 = vld [vmem:[%s2 + $0x2e4] sm:$0xf]
  %v247 = vld [vmem:[%s2 + $0x2e8] sm:$0xf]
  %v248 = vld [vmem:[%s2 + $0x2ec] sm:$0xf]
  %v249 = vld [vmem:[%s2 + $0x2f0] sm:$0xf]
  %v250 = vld [vmem:[%s2 + $0x2f4] sm:$0xf]
  %v251 = vld [vmem:[%s2 + $0x2f8] sm:$0xf]
  %v252 = vld [vmem:[%s2 + $0x2fc] sm:$0xf]
  %v253 = vld [vmem:[%s2 + $0x300] sm:$0xf]
  %v254 = vld [vmem:[%s2 + $0x304] sm:$0xf]
  %v255 = vld [vmem:[%s2 + $0x308] sm:$0xf]
  %v256 = vld [vmem:[%s2 + $0x30c] sm:$0xf]
  %v257 = vld [vmem:[%s2 + $0x310] sm:$0xf]
  %v258 = vld [vmem:[%s2 + $0x314] sm:$0xf]
  %v259 = vld [vmem:[%s2 + $0x318] sm:$0xf]
  %v260 = vld [vmem:[%s2 + $0x31c] sm:$0xf]
  %v261 = vld [vmem:[%s2 + $0x320] sm:$0xf]
  %v262 = vld [vmem:[%s2 + $0x324] sm:$0xf]
  %v263 = vld [vmem:[%s2 + $0x328] sm:$0xf]
  %v264 = vld [vmem:[%s2 + $0x32c] sm:$0xf]
  %v265 = vld [vmem:[%s2 + $0x330] sm:$0xf]
  %v266 = vld [vmem:[%s2 + $0x334] sm:$0xf]
  %v267 = vld [vmem:[%s2 + $0x338] sm:$0xf]
  %v268 = vld [vmem:[%s2 + $0x33c] sm:$0xf]
  %v269 = vld [vmem:[%s2 + $0x340] sm:$0xf]
  %v270 = vld [vmem:[%s2 + $0x344] sm:$0xf]
  %v271 = vld [vmem:[%s2 + $0x348] sm:$0xf]
  %v272 = vld [vmem:[%s2 + $0x34c] sm:$0xf]
  %v273 = vld [vmem:[%s2 + $0x350] sm:$0xf]
  %v274 = vld [vmem:[%s2 + $0x354] sm:$0xf]
  %v275 = vld [vmem:[%s2 + $0x358] sm:$0xf]
  %v276 = vld [vmem:[%s2 + $0x35c] sm:$0xf]
  %v277 = vld [vmem:[%s2 + $0x360] sm:$0xf]
  %v278 = vld [vmem:[%s2 + $0x364] sm:$0xf]
  %v279 = vld [vmem:[%s2 + $0x368] sm:$0xf]
  %v280 = vld [vmem:[%s2 + $0x36c] sm:$0xf]
  %v281 = vld [vmem:[%s2 + $0x370] sm:$0xf]
  %v282 = vld [vmem:[%s2 + $0x374] sm:$0xf]
  %v283 = vld [vmem:[%s2 + $0x378] sm:$0xf]
  %v284 = vld [vmem:[%s2 + $0x37c] sm:$0xf]
  %v285 = vld [vmem:[%s2 + $0x380] sm:$0xf]
  %v286 = vld [vmem:[%s2 + $0x384] sm:$0xf]
  %v287 = vld [vmem:[%s2 + $0x388] sm:$0xf]
  %v288 = vld [vmem:[%s2 + $0x38c] sm:$0xf]
  %v289 = vld [vmem:[%s2 + $0x390] sm:$0xf]
  %v290 = vld [vmem:[%s2 + $0x394] sm:$0xf]
  %v291 = vld [vmem:[%s2 + $0x398] sm:$0xf]
  %v292 = vld [vmem:[%s2 + $0x39c] sm:$0xf]
  %v293 = vld [vmem:[%s2 + $0x3a0] sm:$0xf]
  %v294 = vld [vmem:[%s2 + $0x3a4] sm:$0xf]
  %v295 = vld [vmem:[%s2 + $0x3a8] sm:$0xf]
  %v296 = vld [vmem:[%s2 + $0x3ac] sm:$0xf]
  %v297 = vld [vmem:[%s2 + $0x3b0] sm:$0xf]
  %v298 = vld [vmem:[%s2 + $0x3b4] sm:$0xf]
  %v299 = vld [vmem:[%s2 + $0x3b8] sm:$0xf]
  %v300 = vld [vmem:[%s2 + $0x3bc] sm:$0xf]
  %v301 = vld [vmem:[%s2 + $0x3c0] sm:$0xf]
  %v302 = vld [vmem:[%s2 + $0x3c4] sm:$0xf]
  %v303 = vld [vmem:[%s2 + $0x3c8] sm:$0xf]
  %v304 = vld [vmem:[%s2 + $0x3cc] sm:$0xf]
  %v305 = vld [vmem:[%s2 + $0x3d0] sm:$0xf]
  %v306 = vld [vmem:[%s2 + $0x3d4] sm:$0xf]
  %v307 = vld [vmem:[%s2 + $0x3d8] sm:$0xf]
  %v308 = vld [vmem:[%s2 + $0x3dc] sm:$0xf]
  %v309 = vld [vmem:[%s2 + $0x3e0] sm:$0xf]
  %v310 = vld [vmem:[%s2 + $0x3e4] sm:$0xf]
  %v311 = vld [vmem:[%s2 + $0x3e8] sm:$0xf]
  %v312 = vld [vmem:[%s2 + $0x3ec] sm:$0xf]
  %v313 = vld [vmem:[%s2 + $0x3f0] sm:$0xf]
  %v314 = vld [vmem:[%s2 + $0x3f4] sm:$0xf]
  %v315 = vld [vmem:[%s2 + $0x3f8] sm:$0xf]
  %v316 = vld [vmem:[%s2 + $0x3fc] sm:$0xf]
  %v317 = vld [vmem:[%s2 + $0x400] sm:$0xf]
  %v318 = vld [vmem:[%s2 + $0x404] sm:$0xf]
  %v319 = vld [vmem:[%s2 + $0x408] sm:$0xf]
  %v320 = vld [vmem:[%s2 + $0x40c] sm:$0xf]
  %v321 = vld [vmem:[%s2 + $0x410] sm:$0xf]
  %v322 = vld [vmem:[%s2 + $0x414] sm:$0xf]
  %v323 = vld [vmem:[%s2 + $0x418] sm:$0xf]
  %v324 = vld [vmem:[%s2 + $0x41c] sm:$0xf]
  %v325 = vld [vmem:[%s2 + $0x420] sm:$0xf]
  %v326 = vld [vmem:[%s2 + $0x424] sm:$0xf]
  %v327 = vld [vmem:[%s2 + $0x428] sm:$0xf]
  %v328 = vld [vmem:[%s2 + $0x42c] sm:$0xf]
  %v329 = vld [vmem:[%s2 + $0x430] sm:$0xf]
  %v330 = vld [vmem:[%s2 + $0x434] sm:$0xf]
  %v331 = vld [vmem:[%s2 + $0x438] sm:$0xf]
  %v332 = vld [vmem:[%s2 + $0x43c] sm:$0xf]
  %v333 = vld [vmem:[%s2 + $0x440] sm:$0xf]
  %v334 = vld [vmem:[%s2 + $0x444] sm:$0xf]
  %v335 = vld [vmem:[%s2 + $0x448] sm:$0xf]
  %v336 = vld [vmem:[%s2 + $0x44c] sm:$0xf]
  %v337 = vld [vmem:[%s2 + $0x450] sm:$0xf]
  %v338 = vld [vmem:[%s2 + $0x454] sm:$0xf]
  %v339 = vld [vmem:[%s2 + $0x458] sm:$0xf]
  %v340 = vld [vmem:[%s2 + $0x45c] sm:$0xf]
  %v341 = vld [vmem:[%s2 + $0x460] sm:$0xf]
  %v342 = vld [vmem:[%s2 + $0x464] sm:$0xf]
  %v343 = vld [vmem:[%s2 + $0x468] sm:$0xf]
  %v344 = vld [vmem:[%s2 + $0x46c] sm:$0xf]
  %v345 = vld [vmem:[%s2 + $0x470] sm:$0xf]
  %v346 = vld [vmem:[%s2 + $0x474] sm:$0xf]
  %v347 = vld [vmem:[%s2 + $0x478] sm:$0xf]
  %v348 = vld [vmem:[%s2 + $0x47c] sm:$0xf]
  %v349 = vld [vmem:[%s2 + $0x480] sm:$0xf]
  %v350 = vld [vmem:[%s2 + $0x484] sm:$0xf]
  %v351 = vld [vmem:[%s2 + $0x488] sm:$0xf]
  %v352 = vld [vmem:[%s2 + $0x48c] sm:$0xf]
  %v353 = vld [vmem:[%s2 + $0x490] sm:$0xf]
  %v354 = vld [vmem:[%s2 + $0x494] sm:$0xf]
  %v355 = vld [vmem:[%s2 + $0x498] sm:$0xf]
  %v356 = vld [vmem:[%s2 + $0x49c] sm:$0xf]
  %v357 = vld [vmem:[%s2 + $0x4a0] sm:$0xf]
  %v358 = vld [vmem:[%s2 + $0x4a4] sm:$0xf]
  %v359 = vld [vmem:[%s2 + $0x4a8] sm:$0xf]
  %v360 = vld [vmem:[%s2 + $0x4ac] sm:$0xf]
  %v361 = vld [vmem:[%s2 + $0x4b0] sm:$0xf]
  %v362 = vld [vmem:[%s2 + $0x4b4] sm:$0xf]
  %v363 = vld [vmem:[%s2 + $0x4b8] sm:$0xf]
  %v364 = vld [vmem:[%s2 + $0x4bc] sm:$0xf]
  %v365 = vld [vmem:[%s2 + $0x4c0] sm:$0xf]
  %v366 = vld [vmem:[%s2 + $0x4c4] sm:$0xf]
  %v367 = vld [vmem:[%s2 + $0x4c8] sm:$0xf]
  %v368 = vld [vmem:[%s2 + $0x4cc] sm:$0xf]
  %v369 = vld [vmem:[%s2 + $0x4d0] sm:$0xf]
  %v370 = vld [vmem:[%s2 + $0x4d4] sm:$0xf]
  %v371 = vld [vmem:[%s2 + $0x4d8] sm:$0xf]
  %v372 = vld [vmem:[%s2 + $0x4dc] sm:$0xf]
  %v373 = vld [vmem:[%s2 + $0x4e0] sm:$0xf]
  %v374 = vld [vmem:[%s2 + $0x4e4] sm:$0xf]
  %v375 = vld [vmem:[%s2 + $0x4e8] sm:$0xf]
  %v376 = vld [vmem:[%s2 + $0x4ec] sm:$0xf]
  %v377 = vld [vmem:[%s2 + $0x4f0] sm:$0xf]
  %v378 = vld [vmem:[%s2 + $0x4f4] sm:$0xf]
  %v379 = vld [vmem:[%s2 + $0x4f8] sm:$0xf]
  %v380 = vld [vmem:[%s2 + $0x4fc] sm:$0xf]
  %v381 = vld [vmem:[%s2 + $0x500] sm:$0xf]
  %v382 = vld [vmem:[%s2 + $0x504] sm:$0xf]
  %v383 = vld [vmem:[%s2 + $0x508] sm:$0xf]
  %v384 = vld [vmem:[%s2 + $0x50c] sm:$0xf]
  %v385 = vld [vmem:[%s2 + $0x510] sm:$0xf]
  %v386 = vld [vmem:[%s2 + $0x514] sm:$0xf]
  %v387 = vld [vmem:[%s2 + $0x518] sm:$0xf]
  %v388 = vld [vmem:[%s2 + $0x51c] sm:$0xf]
  %v389 = vld [vmem:[%s2 + $0x520] sm:$0xf]
  %v390 = vld [vmem:[%s2 + $0x524] sm:$0xf]
  %v391 = vld [vmem:[%s2 + $0x528] sm:$0xf]
  %v392 = vld [vmem:[%s2 + $0x52c] sm:$0xf]
  %v393 = vld [vmem:[%s2 + $0x530] sm:$0xf]
  %v394 = vld [vmem:[%s2 + $0x534] sm:$0xf]
  %v395 = vld [vmem:[%s2 + $0x538] sm:$0xf]
  %v396 = vld [vmem:[%s2 + $0x53c] sm:$0xf]
  %v397 = vld [vmem:[%s2 + $0x540] sm:$0xf]
  %v398 = vld [vmem:[%s2 + $0x544] sm:$0xf]
  %v399 = vld [vmem:[%s2 + $0x548] sm:$0xf]
  %v400 = vld [vmem:[%s2 + $0x54c] sm:$0xf]
  %v401 = vld [vmem:[%s2 + $0x550] sm:$0xf]
  %v402 = vld [vmem:[%s2 + $0x554] sm:$0xf]
  %v403 = vld [vmem:[%s2 + $0x558] sm:$0xf]
  %v404 = vld [vmem:[%s2 + $0x55c] sm:$0xf]
  %v405 = vld [vmem:[%s2 + $0x560] sm:$0xf]
  %v406 = vld [vmem:[%s2 + $0x564] sm:$0xf]
  %v407 = vld [vmem:[%s2 + $0x568] sm:$0xf]
  %v408 = vld [vmem:[%s2 + $0x56c] sm:$0xf]
  %v409 = vld [vmem:[%s2 + $0x570] sm:$0xf]
  %v410 = vld [vmem:[%s2 + $0x574] sm:$0xf]
  %v411 = vld [vmem:[%s2 + $0x578] sm:$0xf]
  %v412 = vld [vmem:[%s2 + $0x57c] sm:$0xf]
  %v413 = vld [vmem:[%s2 + $0x580] sm:$0xf]
  %v414 = vld [vmem:[%s2 + $0x584] sm:$0xf]
  %v415 = vld [vmem:[%s2 + $0x588] sm:$0xf]
  %v416 = vld [vmem:[%s2 + $0x58c] sm:$0xf]
  %v417 = vld [vmem:[%s2 + $0x590] sm:$0xf]
  %v418 = vld [vmem:[%s2 + $0x594] sm:$0xf]
  %v419 = vld [vmem:[%s2 + $0x598] sm:$0xf]
  %v420 = vld [vmem:[%s2 + $0x59c] sm:$0xf]
  %v421 = vld [vmem:[%s2 + $0x5a0] sm:$0xf]
  %v422 = vld [vmem:[%s2 + $0x5a4] sm:$0xf]
  %v423 = vld [vmem:[%s2 + $0x5a8] sm:$0xf]
  %v424 = vld [vmem:[%s2 + $0x5ac] sm:$0xf]
  %v425 = vld [vmem:[%s2 + $0x5b0] sm:$0xf]
  %v426 = vld [vmem:[%s2 + $0x5b4] sm:$0xf]
  %v427 = vld [vmem:[%s2 + $0x5b8] sm:$0xf]
  %v428 = vld [vmem:[%s2 + $0x5bc] sm:$0xf]
  %v429 = vld [vmem:[%s2 + $0x5c0] sm:$0xf]
  %v430 = vld [vmem:[%s2 + $0x5c4] sm:$0xf]
  %v431 = vld [vmem:[%s2 + $0x5c8] sm:$0xf]
  %v432 = vld [vmem:[%s2 + $0x5cc] sm:$0xf]
  %v433 = vld [vmem:[%s2 + $0x5d0] sm:$0xf]
  %v434 = vld [vmem:[%s2 + $0x5d4] sm:$0xf]
  %v435 = vld [vmem:[%s2 + $0x5d8] sm:$0xf]
  %v436 = vld [vmem:[%s2 + $0x5dc] sm:$0xf]
  %v437 = vld [vmem:[%s2 + $0x5e0] sm:$0xf]
  %v438 = vld [vmem:[%s2 + $0x5e4] sm:$0xf]
  %v439 = vld [vmem:[%s2 + $0x5e8] sm:$0xf]
  %v440 = vld [vmem:[%s2 + $0x5ec] sm:$0xf]
  %v441 = vld [vmem:[%s2 + $0x5f0] sm:$0xf]
  %v442 = vld [vmem:[%s2 + $0x5f4] sm:$0xf]
  %v443 = vld [vmem:[%s2 + $0x5f8] sm:$0xf]
  %v444 = vld [vmem:[%s2 + $0x5fc] sm:$0xf]
  %v445 = vld [vmem:[%s2 + $0x600] sm:$0xf]
  %v446 = vld [vmem:[%s2 + $0x604] sm:$0xf]
  %v447 = vld [vmem:[%s2 + $0x608] sm:$0xf]
  %v448 = vld [vmem:[%s2 + $0x60c] sm:$0xf]
  %v449 = vld [vmem:[%s2 + $0x610] sm:$0xf]
  %v450 = vld [vmem:[%s2 + $0x614] sm:$0xf]
  %v451 = vld [vmem:[%s2 + $0x618] sm:$0xf]
  %v452 = vld [vmem:[%s2 + $0x61c] sm:$0xf]
  %v453 = vld [vmem:[%s2 + $0x620] sm:$0xf]
  %v454 = vld [vmem:[%s2 + $0x624] sm:$0xf]
  %v455 = vld [vmem:[%s2 + $0x628] sm:$0xf]
  %v456 = vld [vmem:[%s2 + $0x62c] sm:$0xf]
  %v457 = vld [vmem:[%s2 + $0x630] sm:$0xf]
  %v458 = vld [vmem:[%s2 + $0x634] sm:$0xf]
  %v459 = vld [vmem:[%s2 + $0x638] sm:$0xf]
  %v460 = vld [vmem:[%s2 + $0x63c] sm:$0xf]
  %v461 = vld [vmem:[%s2 + $0x640] sm:$0xf]
  %v462 = vld [vmem:[%s2 + $0x644] sm:$0xf]
  %v463 = vld [vmem:[%s2 + $0x648] sm:$0xf]
  %v464 = vld [vmem:[%s2 + $0x64c] sm:$0xf]
  %v465 = vld [vmem:[%s2 + $0x650] sm:$0xf]
  %v466 = vld [vmem:[%s2 + $0x654] sm:$0xf]
  %v467 = vld [vmem:[%s2 + $0x658] sm:$0xf]
  %v468 = vld [vmem:[%s2 + $0x65c] sm:$0xf]
  %v469 = vld [vmem:[%s2 + $0x660] sm:$0xf]
  %v470 = vld [vmem:[%s2 + $0x664] sm:$0xf]
  %v471 = vld [vmem:[%s2 + $0x668] sm:$0xf]
  %v472 = vld [vmem:[%s2 + $0x66c] sm:$0xf]
  %v473 = vld [vmem:[%s2 + $0x670] sm:$0xf]
  %v474 = vld [vmem:[%s2 + $0x674] sm:$0xf]
  %v475 = vld [vmem:[%s2 + $0x678] sm:$0xf]
  %v476 = vld [vmem:[%s2 + $0x67c] sm:$0xf]
  %v477 = vld [vmem:[%s2 + $0x680] sm:$0xf]
  %v478 = vld [vmem:[%s2 + $0x684] sm:$0xf]
  %v479 = vld [vmem:[%s2 + $0x688] sm:$0xf]
  %v480 = vld [vmem:[%s2 + $0x68c] sm:$0xf]
  %v481 = vld [vmem:[%s2 + $0x690] sm:$0xf]
  %v482 = vld [vmem:[%s2 + $0x694] sm:$0xf]
  %v483 = vld [vmem:[%s2 + $0x698] sm:$0xf]
  %v484 = vld [vmem:[%s2 + $0x69c] sm:$0xf]
  %v485 = vld [vmem:[%s2 + $0x6a0] sm:$0xf]
  %v486 = vld [vmem:[%s2 + $0x6a4] sm:$0xf]
  %v487 = vld [vmem:[%s2 + $0x6a8] sm:$0xf]
  %v488 = vld [vmem:[%s2 + $0x6ac] sm:$0xf]
  %v489 = vld [vmem:[%s2 + $0x6b0] sm:$0xf]
  %v490 = vld [vmem:[%s2 + $0x6b4] sm:$0xf]
  %v491 = vld [vmem:[%s2 + $0x6b8] sm:$0xf]
  %v492 = vld [vmem:[%s2 + $0x6bc] sm:$0xf]
  %v493 = vld [vmem:[%s2 + $0x6c0] sm:$0xf]
  %v494 = vld [vmem:[%s2 + $0x6c4] sm:$0xf]
  %v495 = vld [vmem:[%s2 + $0x6c8] sm:$0xf]
  %v496 = vld [vmem:[%s2 + $0x6cc] sm:$0xf]
  %v497 = vld [vmem:[%s2 + $0x6d0] sm:$0xf]
  %v498 = vld [vmem:[%s2 + $0x6d4] sm:$0xf]
  %v499 = vld [vmem:[%s2 + $0x6d8] sm:$0xf]
  %v500 = vld [vmem:[%s2 + $0x6dc] sm:$0xf]
  %v501 = vld [vmem:[%s2 + $0x6e0] sm:$0xf]
  %v502 = vld [vmem:[%s2 + $0x6e4] sm:$0xf]
  %v503 = vld [vmem:[%s2 + $0x6e8] sm:$0xf]
  %v504 = vld [vmem:[%s2 + $0x6ec] sm:$0xf]
  %v505 = vld [vmem:[%s2 + $0x6f0] sm:$0xf]
  %v506 = vld [vmem:[%s2 + $0x6f4] sm:$0xf]
  %v507 = vld [vmem:[%s2 + $0x6f8] sm:$0xf]
  %v508 = vld [vmem:[%s2 + $0x6fc] sm:$0xf]
  %v509 = vld [vmem:[%s2 + $0x700] sm:$0xf]
  %v510 = vld [vmem:[%s2 + $0x704] sm:$0xf]
  %v511 = vld [vmem:[%s2 + $0x708] sm:$0xf]
  %v512 = vld [vmem:[%s2 + $0x70c] sm:$0xf]
  %v513 = vld [vmem:[%s2 + $0x710] sm:$0xf]
  %v514 = vld [vmem:[%s2 + $0x714] sm:$0xf]
  %v515 = vld [vmem:[%s2 + $0x718] sm:$0xf]
  %v516 = vld [vmem:[%s2 + $0x71c] sm:$0xf]
  %v517 = vld [vmem:[%s2 + $0x720] sm:$0xf]
  %v518 = vld [vmem:[%s2 + $0x724] sm:$0xf]
  %v519 = vld [vmem:[%s2 + $0x728] sm:$0xf]
  %v520 = vld [vmem:[%s2 + $0x72c] sm:$0xf]
  %v521 = vld [vmem:[%s2 + $0x730] sm:$0xf]
  %v522 = vld [vmem:[%s2 + $0x734] sm:$0xf]
  %v523 = vld [vmem:[%s2 + $0x738] sm:$0xf]
  %v524 = vld [vmem:[%s2 + $0x73c] sm:$0xf]
  %v525 = vld [vmem:[%s2 + $0x740] sm:$0xf]
  %v526 = vld [vmem:[%s2 + $0x744] sm:$0xf]
  %v527 = vld [vmem:[%s2 + $0x748] sm:$0xf]
  %v528 = vld [vmem:[%s2 + $0x74c] sm:$0xf]
  %v529 = vld [vmem:[%s2 + $0x750] sm:$0xf]
  %v530 = vld [vmem:[%s2 + $0x754] sm:$0xf]
  %v531 = vld [vmem:[%s2 + $0x758] sm:$0xf]
  %v532 = vld [vmem:[%s2 + $0x75c] sm:$0xf]
  %v533 = vld [vmem:[%s2 + $0x760] sm:$0xf]
  %v534 = vld [vmem:[%s2 + $0x764] sm:$0xf]
  %v535 = vld [vmem:[%s2 + $0x768] sm:$0xf]
  %v536 = vld [vmem:[%s2 + $0x76c] sm:$0xf]
  %v537 = vld [vmem:[%s2 + $0x770] sm:$0xf]
  %v538 = vld [vmem:[%s2 + $0x774] sm:$0xf]
  %v539 = vld [vmem:[%s2 + $0x778] sm:$0xf]
  %v540 = vld [vmem:[%s2 + $0x77c] sm:$0xf]
  %v541 = vld [vmem:[%s2 + $0x780] sm:$0xf]
  %v542 = vld [vmem:[%s2 + $0x784] sm:$0xf]
  %v543 = vld [vmem:[%s2 + $0x788] sm:$0xf]
  %v544 = vld [vmem:[%s2 + $0x78c] sm:$0xf]
  %v545 = vld [vmem:[%s2 + $0x790] sm:$0xf]
  %v546 = vld [vmem:[%s2 + $0x794] sm:$0xf]
  %v547 = vld [vmem:[%s2 + $0x798] sm:$0xf]
  %v548 = vld [vmem:[%s2 + $0x79c] sm:$0xf]
  %v549 = vld [vmem:[%s2 + $0x7a0] sm:$0xf]
  %v550 = vld [vmem:[%s2 + $0x7a4] sm:$0xf]
  %v551 = vld [vmem:[%s2 + $0x7a8] sm:$0xf]
  %v552 = vld [vmem:[%s2 + $0x7ac] sm:$0xf]
  %v553 = vld [vmem:[%s2 + $0x7b0] sm:$0xf]
  %v554 = vld [vmem:[%s2 + $0x7b4] sm:$0xf]
  %v555 = vld [vmem:[%s2 + $0x7b8] sm:$0xf]
  %v556 = vld [vmem:[%s2 + $0x7bc] sm:$0xf]
  %v557 = vld [vmem:[%s2 + $0x7c0] sm:$0xf]
  %v558 = vld [vmem:[%s2 + $0x7c4] sm:$0xf]
  %v559 = vld [vmem:[%s2 + $0x7c8] sm:$0xf]
  %v560 = vld [vmem:[%s2 + $0x7cc] sm:$0xf]
  %v561 = vld [vmem:[%s2 + $0x7d0] sm:$0xf]
  %v562 = vld [vmem:[%s2 + $0x7d4] sm:$0xf]
  %v563 = vld [vmem:[%s2 + $0x7d8] sm:$0xf]
  %v564 = vld [vmem:[%s2 + $0x7dc] sm:$0xf]
  %v565 = vld [vmem:[%s2 + $0x7e0] sm:$0xf]
  %v566 = vld [vmem:[%s2 + $0x7e4] sm:$0xf]
  %v567 = vld [vmem:[%s2 + $0x7e8] sm:$0xf]
  %v568 = vld [vmem:[%s2 + $0x7ec] sm:$0xf]
  %v569 = vld [vmem:[%s2 + $0x7f0] sm:$0xf]
  %v570 = vld [vmem:[%s2 + $0x7f4] sm:$0xf]
  %v571 = vld [vmem:[%s2 + $0x7f8] sm:$0xf]
  %v572 = vld [vmem:[%s2 + $0x7fc] sm:$0xf]
  %v573 = vld [vmem:[%s2 + $0x800] sm:$0xf]
  %v574 = vld [vmem:[%s2 + $0x804] sm:$0xf]
  %v575 = vld [vmem:[%s2 + $0x808] sm:$0xf]
  %v576 = vld [vmem:[%s2 + $0x80c] sm:$0xf]
  %v577 = vld [vmem:[%s2 + $0x810] sm:$0xf]
  %v578 = vld [vmem:[%s2 + $0x814] sm:$0xf]
  %v579 = vld [vmem:[%s2 + $0x818] sm:$0xf]
  %v580 = vld [vmem:[%s2 + $0x81c] sm:$0xf]
  %v581 = vld [vmem:[%s2 + $0x820] sm:$0xf]
  %v582 = vld [vmem:[%s2 + $0x824] sm:$0xf]
  %v583 = vld [vmem:[%s3] sm:$0x1]
  %v585 = vlaneseq
  %v586 = vshrl.u32 %v585, 7
  %v587 = vsub.s32 0, %v586
  %v588 = vrot.slane %v583, %v587
  %v624 = vunpack.c.l.b16 %v27
  %v625 = vunpack.c.h.b16 %v27
  %v626 = vunpack.c.l.b16 %v28
  %v627 = vunpack.c.h.b16 %v28
  %v628 = vunpack.c.l.b16 %v29
  %v629 = vunpack.c.h.b16 %v29
  %v630 = vunpack.c.l.b16 %v30
  %v631 = vunpack.c.h.b16 %v30
  %v632 = vunpack.c.l.b16 %v31
  %v633 = vunpack.c.h.b16 %v31
  %v634 = vunpack.c.l.b16 %v32
  %v635 = vunpack.c.h.b16 %v32
  %v636 = vunpack.c.l.b16 %v33
  %v637 = vunpack.c.h.b16 %v33
  %v638 = vunpack.c.l.b16 %v34
  %v639 = vunpack.c.h.b16 %v34
  %v640 = vunpack.c.l.b16 %v35
  %v641 = vunpack.c.h.b16 %v35
  %v642 = vunpack.c.l.b16 %v36
  %v643 = vunpack.c.h.b16 %v36
  %v644 = vunpack.c.l.b16 %v37
  %v645 = vunpack.c.h.b16 %v37
  %v646 = vunpack.c.l.b16 %v38
  %v647 = vunpack.c.h.b16 %v38
  %v648 = vunpack.c.l.b16 %v39
  %v649 = vunpack.c.h.b16 %v39
  %v650 = vunpack.c.l.b16 %v40
  %v651 = vunpack.c.h.b16 %v40
  %v652 = vunpack.c.l.b16 %v41
  %v653 = vunpack.c.h.b16 %v41
  %v654 = vunpack.c.l.b16 %v42
  %v655 = vunpack.c.h.b16 %v42
  %v656 = vunpack.c.l.b16 %v43
  %v657 = vunpack.c.l.b16 %v44
  %v658 = vunpack.c.h.b16 %v44
  %v659 = vunpack.c.l.b16 %v45
  %v660 = vunpack.c.h.b16 %v45
  %v661 = vunpack.c.l.b16 %v46
  %v662 = vunpack.c.h.b16 %v46
  %v663 = vunpack.c.l.b16 %v47
  %v664 = vunpack.c.h.b16 %v47
  %v665 = vunpack.c.l.b16 %v48
  %v666 = vunpack.c.h.b16 %v48
  %v667 = vunpack.c.l.b16 %v49
  %v668 = vunpack.c.h.b16 %v49
  %v669 = vunpack.c.l.b16 %v50
  %v670 = vunpack.c.h.b16 %v50
  %v671 = vunpack.c.l.b16 %v51
  %v672 = vunpack.c.h.b16 %v51
  %v673 = vunpack.c.l.b16 %v52
  %v674 = vunpack.c.h.b16 %v52
  %v675 = vunpack.c.l.b16 %v53
  %v676 = vunpack.c.h.b16 %v53
  %v677 = vunpack.c.l.b16 %v54
  %v678 = vunpack.c.h.b16 %v54
  %v679 = vunpack.c.l.b16 %v55
  %v680 = vunpack.c.h.b16 %v55
  %v681 = vunpack.c.l.b16 %v56
  %v682 = vunpack.c.h.b16 %v56
  %v683 = vunpack.c.l.b16 %v57
  %v684 = vunpack.c.h.b16 %v57
  %v685 = vunpack.c.l.b16 %v58
  %v686 = vunpack.c.h.b16 %v58
  %v687 = vunpack.c.l.b16 %v59
  %v688 = vunpack.c.h.b16 %v59
  %v689 = vunpack.c.l.b16 %v60
  %v690 = vpack.c.b16 %v657, %v624
  %v691 = vpack.c.b16 %v658, %v625
  %v692 = vpack.c.b16 %v659, %v626
  %v693 = vpack.c.b16 %v660, %v627
  %v694 = vpack.c.b16 %v661, %v628
  %v695 = vpack.c.b16 %v662, %v629
  %v696 = vpack.c.b16 %v663, %v630
  %v697 = vpack.c.b16 %v664, %v631
  %v698 = vpack.c.b16 %v665, %v632
  %v699 = vpack.c.b16 %v666, %v633
  %v700 = vpack.c.b16 %v667, %v634
  %v701 = vpack.c.b16 %v668, %v635
  %v702 = vpack.c.b16 %v669, %v636
  %v703 = vpack.c.b16 %v670, %v637
  %v704 = vpack.c.b16 %v671, %v638
  %v705 = vpack.c.b16 %v672, %v639
  %v706 = vpack.c.b16 %v673, %v640
  %v707 = vpack.c.b16 %v674, %v641
  %v708 = vpack.c.b16 %v675, %v642
  %v709 = vpack.c.b16 %v676, %v643
  %v710 = vpack.c.b16 %v677, %v644
  %v711 = vpack.c.b16 %v678, %v645
  %v712 = vpack.c.b16 %v679, %v646
  %v713 = vpack.c.b16 %v680, %v647
  %v714 = vpack.c.b16 %v681, %v648
  %v715 = vpack.c.b16 %v682, %v649
  %v716 = vpack.c.b16 %v683, %v650
  %v717 = vpack.c.b16 %v684, %v651
  %v718 = vpack.c.b16 %v685, %v652
  %v719 = vpack.c.b16 %v686, %v653
  %v720 = vpack.c.b16 %v687, %v654
  %v721 = vpack.c.b16 %v688, %v655
  %v722 = vpack.c.b16 %v689, %v656
  %v1277 = vunpack.c.l.b16 %v61
  %v1278 = vunpack.c.l.b16 %v62
  %v1279 = vunpack.c.l.b16 %v63
  %v1280 = vunpack.c.l.b16 %v64
  %v1281 = vunpack.c.l.b16 %v65
  %v1282 = vunpack.c.l.b16 %v66
  %v1283 = vunpack.c.l.b16 %v67
  %v1284 = vunpack.c.l.b16 %v68
  %v1285 = vunpack.c.l.b16 %v69
  %v1286 = vunpack.c.l.b16 %v70
  %v1287 = vunpack.c.l.b16 %v71
  %v1288 = vunpack.c.l.b16 %v72
  %v1289 = vunpack.c.l.b16 %v73
  %v1290 = vunpack.c.l.b16 %v74
  %v1291 = vunpack.c.l.b16 %v75
  %v1292 = vunpack.c.l.b16 %v76
  %v1293 = vunpack.c.l.b16 %v77
  %v1294 = vunpack.c.l.b16 %v78
  %v1295 = vunpack.c.l.b16 %v79
  %v1296 = vunpack.c.l.b16 %v80
  %v1297 = vunpack.c.l.b16 %v81
  %v1298 = vunpack.c.l.b16 %v82
  %v1299 = vunpack.c.l.b16 %v83
  %v1300 = vunpack.c.l.b16 %v84
  %v1301 = vunpack.c.l.b16 %v85
  %v1302 = vunpack.c.l.b16 %v86
  %v1303 = vunpack.c.l.b16 %v87
  %v1304 = vunpack.c.l.b16 %v88
  %v1305 = vunpack.c.l.b16 %v89
  %v1306 = vunpack.c.l.b16 %v90
  %v1307 = vunpack.c.l.b16 %v91
  %v1308 = vunpack.c.l.b16 %v92
  %v1309 = vunpack.c.l.b16 %v93
  %v1310 = vunpack.c.l.b16 %v94
  %v1311 = vunpack.c.l.b16 %v95
  %v1312 = vunpack.c.l.b16 %v96
  %v1313 = vunpack.c.l.b16 %v97
  %v1314 = vunpack.c.l.b16 %v98
  %v1315 = vunpack.c.l.b16 %v99
  %v1316 = vunpack.c.l.b16 %v100
  %v1317 = vunpack.c.l.b16 %v101
  %v1318 = vunpack.c.l.b16 %v102
  %v1319 = vunpack.c.l.b16 %v103
  %v1320 = vunpack.c.l.b16 %v104
  %v1321 = vunpack.c.l.b16 %v105
  %v1322 = vunpack.c.l.b16 %v106
  %v1323 = vunpack.c.l.b16 %v107
  %v1324 = vunpack.c.l.b16 %v108
  %v1325 = vunpack.c.l.b16 %v109
  %v1326 = vunpack.c.l.b16 %v110
  %v1327 = vunpack.c.l.b16 %v111
  %v1328 = vunpack.c.l.b16 %v112
  %v1329 = vunpack.c.l.b16 %v113
  %v1330 = vunpack.c.l.b16 %v114
  %v1331 = vunpack.c.l.b16 %v115
  %v1332 = vunpack.c.l.b16 %v116
  %v1333 = vunpack.c.l.b16 %v117
  %v1334 = vunpack.c.l.b16 %v118
  %v1335 = vunpack.c.l.b16 %v119
  %v1336 = vunpack.c.l.b16 %v120
  %v1337 = vunpack.c.l.b16 %v121
  %v1338 = vunpack.c.l.b16 %v122
  %v1339 = vunpack.c.l.b16 %v123
  %v1340 = vunpack.c.l.b16 %v124
  %v1341 = vunpack.c.l.b16 %v125
  %v1342 = vunpack.c.l.b16 %v126
  %v1343 = vunpack.c.l.b16 %v127
  %v1344 = vunpack.c.l.b16 %v128
  %v1345 = vunpack.c.l.b16 %v129
  %v1346 = vunpack.c.l.b16 %v130
  %v1347 = vunpack.c.l.b16 %v131
  %v1348 = vunpack.c.l.b16 %v132
  %v1349 = vunpack.c.l.b16 %v133
  %v1350 = vunpack.c.l.b16 %v134
  %v1351 = vunpack.c.l.b16 %v135
  %v1352 = vunpack.c.l.b16 %v136
  %v1353 = vunpack.c.l.b16 %v137
  %v1354 = vunpack.c.l.b16 %v138
  %v1355 = vunpack.c.l.b16 %v139
  %v1356 = vunpack.c.l.b16 %v140
  %v1357 = vunpack.c.l.b16 %v141
  %v1358 = vunpack.c.l.b16 %v142
  %v1359 = vunpack.c.l.b16 %v143
  %v1360 = vunpack.c.l.b16 %v144
  %v1361 = vunpack.c.l.b16 %v145
  %v1362 = vunpack.c.l.b16 %v146
  %v1363 = vunpack.c.l.b16 %v147
  %v1364 = vunpack.c.l.b16 %v148
  %v1365 = vunpack.c.l.b16 %v149
  %v1366 = vunpack.c.l.b16 %v150
  %v1367 = vunpack.c.l.b16 %v151
  %v1368 = vunpack.c.l.b16 %v152
  %v1369 = vunpack.c.l.b16 %v153
  %v1370 = vunpack.c.l.b16 %v154
  %v1371 = vunpack.c.l.b16 %v155
  %v1372 = vunpack.c.l.b16 %v156
  %v1373 = vunpack.c.l.b16 %v157
  %v1374 = vunpack.c.l.b16 %v158
  %v1375 = vunpack.c.l.b16 %v159
  %v1376 = vunpack.c.l.b16 %v160
  %v1377 = vunpack.c.l.b16 %v161
  %v1378 = vunpack.c.l.b16 %v162
  %v1379 = vunpack.c.l.b16 %v163
  %v1380 = vunpack.c.l.b16 %v164
  %v1381 = vunpack.c.l.b16 %v165
  %v1382 = vunpack.c.l.b16 %v166
  %v1383 = vunpack.c.l.b16 %v167
  %v1384 = vunpack.c.l.b16 %v168
  %v1385 = vunpack.c.l.b16 %v169
  %v1386 = vunpack.c.l.b16 %v170
  %v1387 = vunpack.c.l.b16 %v171
  %v1388 = vunpack.c.l.b16 %v172
  %v1389 = vunpack.c.l.b16 %v173
  %v1390 = vunpack.c.l.b16 %v174
  %v1391 = vunpack.c.l.b16 %v175
  %v1392 = vunpack.c.l.b16 %v176
  %v1393 = vunpack.c.l.b16 %v177
  %v1394 = vunpack.c.l.b16 %v178
  %v1395 = vunpack.c.l.b16 %v179
  %v1396 = vunpack.c.l.b16 %v180
  %v1397 = vunpack.c.l.b16 %v181
  %v1398 = vunpack.c.l.b16 %v182
  %v1399 = vunpack.c.l.b16 %v183
  %v1400 = vunpack.c.l.b16 %v184
  %v1401 = vunpack.c.l.b16 %v185
  %v1402 = vunpack.c.l.b16 %v186
  %v1403 = vunpack.c.l.b16 %v187
  %v1404 = vunpack.c.l.b16 %v188
  %v1405 = vunpack.c.l.b16 %v189
  %v1406 = vunpack.c.l.b16 %v190
  %v1407 = vunpack.c.l.b16 %v191
  %v1408 = vunpack.c.l.b16 %v192
  %v1409 = vunpack.c.l.b16 %v193
  %v1410 = vunpack.c.l.b16 %v194
  %v1411 = vunpack.c.l.b16 %v195
  %v1412 = vunpack.c.l.b16 %v196
  %v1413 = vunpack.c.l.b16 %v197
  %v1414 = vunpack.c.l.b16 %v198
  %v1415 = vunpack.c.l.b16 %v199
  %v1416 = vunpack.c.l.b16 %v200
  %v1417 = vunpack.c.l.b16 %v201
  %v1418 = vunpack.c.l.b16 %v202
  %v1419 = vunpack.c.l.b16 %v203
  %v1420 = vunpack.c.l.b16 %v204
  %v1421 = vunpack.c.l.b16 %v205
  %v1422 = vunpack.c.l.b16 %v206
  %v1423 = vunpack.c.l.b16 %v207
  %v1424 = vunpack.c.l.b16 %v208
  %v1425 = vunpack.c.l.b16 %v209
  %v1426 = vunpack.c.l.b16 %v210
  %v1427 = vunpack.c.l.b16 %v211
  %v1428 = vunpack.c.l.b16 %v212
  %v1429 = vunpack.c.l.b16 %v213
  %v1430 = vunpack.c.l.b16 %v214
  %v1431 = vunpack.c.l.b16 %v215
  %v1432 = vunpack.c.l.b16 %v216
  %v1433 = vunpack.c.l.b16 %v217
  %v1434 = vunpack.c.l.b16 %v218
  %v1435 = vunpack.c.l.b16 %v219
  %v1436 = vunpack.c.l.b16 %v220
  %v1437 = vunpack.c.l.b16 %v221
  %v1438 = vunpack.c.l.b16 %v222
  %v1439 = vunpack.c.l.b16 %v223
  %v1440 = vunpack.c.l.b16 %v224
  %v1441 = vunpack.c.l.b16 %v225
  %v1442 = vunpack.c.l.b16 %v226
  %v1443 = vunpack.c.l.b16 %v227
  %v1444 = vunpack.c.l.b16 %v228
  %v1445 = vunpack.c.l.b16 %v229
  %v1446 = vunpack.c.l.b16 %v230
  %v1447 = vunpack.c.l.b16 %v231
  %v1448 = vunpack.c.l.b16 %v232
  %v1449 = vunpack.c.l.b16 %v233
  %v1450 = vunpack.c.l.b16 %v234
  %v1451 = vunpack.c.l.b16 %v235
  %v1452 = vunpack.c.l.b16 %v236
  %v1453 = vunpack.c.l.b16 %v237
  %v1454 = vunpack.c.l.b16 %v238
  %v1455 = vunpack.c.l.b16 %v239
  %v1456 = vunpack.c.l.b16 %v240
  %v1457 = vunpack.c.l.b16 %v241
  %v1458 = vunpack.c.l.b16 %v242
  %v1459 = vunpack.c.l.b16 %v243
  %v1460 = vunpack.c.l.b16 %v244
  %v1461 = vunpack.c.l.b16 %v245
  %v1462 = vunpack.c.l.b16 %v246
  %v1463 = vunpack.c.l.b16 %v247
  %v1464 = vunpack.c.l.b16 %v248
  %v1465 = vunpack.c.l.b16 %v249
  %v1466 = vunpack.c.l.b16 %v250
  %v1467 = vunpack.c.l.b16 %v251
  %v1468 = vunpack.c.l.b16 %v252
  %v1469 = vunpack.c.l.b16 %v253
  %v1470 = vunpack.c.l.b16 %v254
  %v1471 = vunpack.c.l.b16 %v255
  %v1472 = vunpack.c.l.b16 %v256
  %v1473 = vunpack.c.l.b16 %v257
  %v1474 = vunpack.c.l.b16 %v258
  %v1475 = vunpack.c.l.b16 %v259
  %v1476 = vunpack.c.l.b16 %v260
  %v1477 = vunpack.c.l.b16 %v261
  %v1478 = vunpack.c.l.b16 %v262
  %v1479 = vunpack.c.l.b16 %v263
  %v1480 = vunpack.c.l.b16 %v264
  %v1481 = vunpack.c.l.b16 %v265
  %v1482 = vunpack.c.l.b16 %v266
  %v1483 = vunpack.c.l.b16 %v267
  %v1484 = vunpack.c.l.b16 %v268
  %v1485 = vunpack.c.l.b16 %v269
  %v1486 = vunpack.c.l.b16 %v270
  %v1487 = vunpack.c.l.b16 %v271
  %v1488 = vunpack.c.l.b16 %v272
  %v1489 = vunpack.c.l.b16 %v273
  %v1490 = vunpack.c.l.b16 %v274
  %v1491 = vunpack.c.l.b16 %v275
  %v1492 = vunpack.c.l.b16 %v276
  %v1493 = vunpack.c.l.b16 %v277
  %v1494 = vunpack.c.l.b16 %v278
  %v1495 = vunpack.c.l.b16 %v279
  %v1496 = vunpack.c.l.b16 %v280
  %v1497 = vunpack.c.l.b16 %v281
  %v1498 = vunpack.c.l.b16 %v282
  %v1499 = vunpack.c.l.b16 %v283
  %v1500 = vunpack.c.l.b16 %v284
  %v1501 = vunpack.c.l.b16 %v285
  %v1502 = vunpack.c.l.b16 %v286
  %v1503 = vunpack.c.l.b16 %v287
  %v1504 = vunpack.c.l.b16 %v288
  %v1505 = vunpack.c.l.b16 %v289
  %v1506 = vunpack.c.l.b16 %v290
  %v1507 = vunpack.c.l.b16 %v291
  %v1508 = vunpack.c.l.b16 %v292
  %v1509 = vunpack.c.l.b16 %v293
  %v1510 = vunpack.c.l.b16 %v294
  %v1511 = vunpack.c.l.b16 %v295
  %v1512 = vunpack.c.l.b16 %v296
  %v1513 = vunpack.c.l.b16 %v297
  %v1514 = vunpack.c.l.b16 %v298
  %v1515 = vunpack.c.l.b16 %v299
  %v1516 = vunpack.c.l.b16 %v300
  %v1517 = vunpack.c.l.b16 %v301
  %v1518 = vunpack.c.l.b16 %v302
  %v1519 = vunpack.c.l.b16 %v303
  %v1520 = vunpack.c.l.b16 %v304
  %v1521 = vunpack.c.l.b16 %v305
  %v1522 = vunpack.c.l.b16 %v306
  %v1523 = vunpack.c.l.b16 %v307
  %v1524 = vunpack.c.l.b16 %v308
  %v1525 = vunpack.c.l.b16 %v309
  %v1526 = vunpack.c.l.b16 %v310
  %v1527 = vunpack.c.l.b16 %v311
  %v1528 = vunpack.c.l.b16 %v312
  %v1529 = vunpack.c.l.b16 %v313
  %v1530 = vunpack.c.l.b16 %v314
  %v1531 = vunpack.c.l.b16 %v315
  %v1532 = vunpack.c.l.b16 %v316
  %v1533 = vunpack.c.l.b16 %v317
  %v1534 = vunpack.c.l.b16 %v318
  %v1535 = vunpack.c.l.b16 %v319
  %v1536 = vunpack.c.l.b16 %v320
  %v1537 = vunpack.c.l.b16 %v321
  %v1538 = vunpack.c.l.b16 %v322
  %v1539 = vunpack.c.l.b16 %v323
  %v1540 = vunpack.c.l.b16 %v324
  %v1541 = vunpack.c.l.b16 %v325
  %v1542 = vunpack.c.l.b16 %v326
  %v1543 = vunpack.c.l.b16 %v327
  %v1544 = vunpack.c.l.b16 %v328
  %v1545 = vunpack.c.l.b16 %v329
  %v1546 = vunpack.c.l.b16 %v330
  %v1547 = vunpack.c.l.b16 %v331
  %v1548 = vunpack.c.l.b16 %v332
  %v1549 = vunpack.c.l.b16 %v333
  %v1550 = vunpack.c.l.b16 %v334
  %v1551 = vunpack.c.l.b16 %v335
  %v1552 = vunpack.c.l.b16 %v336
  %v1553 = vunpack.c.l.b16 %v337
  %v1554 = vunpack.c.l.b16 %v338
  %v1555 = vunpack.c.l.b16 %v339
  %v1556 = vunpack.c.l.b16 %v340
  %v1557 = vunpack.c.l.b16 %v341
  %v1558 = vunpack.c.l.b16 %v342
  %v1559 = vunpack.c.l.b16 %v343
  %v1560 = vunpack.c.l.b16 %v344
  %v1561 = vunpack.c.l.b16 %v345
  %v1562 = vunpack.c.l.b16 %v346
  %v1563 = vunpack.c.l.b16 %v347
  %v1564 = vunpack.c.l.b16 %v348
  %v1565 = vunpack.c.l.b16 %v349
  %v1566 = vunpack.c.l.b16 %v350
  %v1567 = vunpack.c.l.b16 %v351
  %v1568 = vunpack.c.l.b16 %v352
  %v1569 = vunpack.c.l.b16 %v353
  %v1570 = vunpack.c.l.b16 %v354
  %v1571 = vunpack.c.l.b16 %v355
  %v1572 = vunpack.c.l.b16 %v356
  %v1573 = vunpack.c.l.b16 %v357
  %v1574 = vunpack.c.l.b16 %v358
  %v1575 = vunpack.c.l.b16 %v359
  %v1576 = vunpack.c.l.b16 %v360
  %v1577 = vunpack.c.l.b16 %v361
  %v1578 = vunpack.c.l.b16 %v362
  %v1579 = vunpack.c.l.b16 %v363
  %v1580 = vunpack.c.l.b16 %v364
  %v1581 = vunpack.c.l.b16 %v365
  %v1582 = vunpack.c.l.b16 %v366
  %v1583 = vunpack.c.l.b16 %v367
  %v1584 = vunpack.c.l.b16 %v368
  %v1585 = vunpack.c.l.b16 %v369
  %v1586 = vunpack.c.l.b16 %v370
  %v1587 = vunpack.c.l.b16 %v371
  %v1588 = vunpack.c.l.b16 %v372
  %v1589 = vunpack.c.l.b16 %v373
  %v1590 = vunpack.c.l.b16 %v374
  %v1591 = vunpack.c.l.b16 %v375
  %v1592 = vunpack.c.l.b16 %v376
  %v1593 = vunpack.c.l.b16 %v377
  %v1594 = vunpack.c.l.b16 %v378
  %v1595 = vunpack.c.l.b16 %v379
  %v1596 = vunpack.c.l.b16 %v380
  %v1597 = vunpack.c.l.b16 %v381
  %v1598 = vunpack.c.l.b16 %v382
  %v1599 = vunpack.c.l.b16 %v383
  %v1600 = vunpack.c.l.b16 %v384
  %v1601 = vunpack.c.l.b16 %v385
  %v1602 = vunpack.c.l.b16 %v386
  %v1603 = vunpack.c.l.b16 %v387
  %v1604 = vunpack.c.l.b16 %v388
  %v1605 = vunpack.c.l.b16 %v389
  %v1606 = vunpack.c.l.b16 %v390
  %v1607 = vunpack.c.l.b16 %v391
  %v1608 = vunpack.c.l.b16 %v392
  %v1609 = vunpack.c.l.b16 %v393
  %v1610 = vunpack.c.l.b16 %v394
  %v1611 = vunpack.c.l.b16 %v395
  %v1612 = vunpack.c.l.b16 %v396
  %v1613 = vunpack.c.l.b16 %v397
  %v1614 = vunpack.c.l.b16 %v398
  %v1615 = vunpack.c.l.b16 %v399
  %v1616 = vunpack.c.l.b16 %v400
  %v1617 = vunpack.c.l.b16 %v401
  %v1618 = vunpack.c.l.b16 %v402
  %v1619 = vunpack.c.l.b16 %v403
  %v1620 = vunpack.c.l.b16 %v404
  %v1621 = vunpack.c.l.b16 %v405
  %v1622 = vunpack.c.l.b16 %v406
  %v1623 = vunpack.c.l.b16 %v407
  %v1624 = vunpack.c.l.b16 %v408
  %v1625 = vunpack.c.l.b16 %v409
  %v1626 = vunpack.c.l.b16 %v410
  %v1627 = vunpack.c.l.b16 %v411
  %v1628 = vunpack.c.l.b16 %v412
  %v1629 = vunpack.c.l.b16 %v413
  %v1630 = vunpack.c.l.b16 %v414
  %v1631 = vunpack.c.l.b16 %v415
  %v1632 = vunpack.c.l.b16 %v416
  %v1633 = vunpack.c.l.b16 %v417
  %v1634 = vunpack.c.l.b16 %v418
  %v1635 = vunpack.c.l.b16 %v419
  %v1636 = vunpack.c.l.b16 %v420
  %v1637 = vunpack.c.l.b16 %v421
  %v1638 = vunpack.c.l.b16 %v422
  %v1639 = vunpack.c.l.b16 %v423
  %v1640 = vunpack.c.l.b16 %v424
  %v1641 = vunpack.c.l.b16 %v425
  %v1642 = vunpack.c.l.b16 %v426
  %v1643 = vunpack.c.l.b16 %v427
  %v1644 = vunpack.c.l.b16 %v428
  %v1645 = vunpack.c.l.b16 %v429
  %v1646 = vunpack.c.l.b16 %v430
  %v1647 = vunpack.c.l.b16 %v431
  %v1648 = vunpack.c.l.b16 %v432
  %v1649 = vunpack.c.l.b16 %v433
  %v1650 = vunpack.c.l.b16 %v434
  %v1651 = vunpack.c.l.b16 %v435
  %v1652 = vunpack.c.l.b16 %v436
  %v1653 = vunpack.c.l.b16 %v437
  %v1654 = vunpack.c.l.b16 %v438
  %v1655 = vunpack.c.l.b16 %v439
  %v1656 = vunpack.c.l.b16 %v440
  %v1657 = vunpack.c.l.b16 %v441
  %v1658 = vunpack.c.l.b16 %v442
  %v1659 = vunpack.c.l.b16 %v443
  %v1660 = vunpack.c.l.b16 %v444
  %v1661 = vunpack.c.l.b16 %v445
  %v1662 = vunpack.c.l.b16 %v446
  %v1663 = vunpack.c.l.b16 %v447
  %v1664 = vunpack.c.l.b16 %v448
  %v1665 = vunpack.c.l.b16 %v449
  %v1666 = vunpack.c.l.b16 %v450
  %v1667 = vunpack.c.l.b16 %v451
  %v1668 = vunpack.c.l.b16 %v452
  %v1669 = vunpack.c.l.b16 %v453
  %v1670 = vunpack.c.l.b16 %v454
  %v1671 = vunpack.c.l.b16 %v455
  %v1672 = vunpack.c.l.b16 %v456
  %v1673 = vunpack.c.l.b16 %v457
  %v1674 = vunpack.c.l.b16 %v458
  %v1675 = vunpack.c.l.b16 %v459
  %v1676 = vunpack.c.l.b16 %v460
  %v1677 = vunpack.c.l.b16 %v461
  %v1678 = vunpack.c.l.b16 %v462
  %v1679 = vunpack.c.l.b16 %v463
  %v1680 = vunpack.c.l.b16 %v464
  %v1681 = vunpack.c.l.b16 %v465
  %v1682 = vunpack.c.l.b16 %v466
  %v1683 = vunpack.c.l.b16 %v467
  %v1684 = vunpack.c.l.b16 %v468
  %v1685 = vunpack.c.l.b16 %v469
  %v1686 = vunpack.c.l.b16 %v470
  %v1687 = vunpack.c.l.b16 %v471
  %v1688 = vunpack.c.l.b16 %v472
  %v1689 = vunpack.c.l.b16 %v473
  %v1690 = vunpack.c.l.b16 %v474
  %v1691 = vunpack.c.l.b16 %v475
  %v1692 = vunpack.c.l.b16 %v476
  %v1693 = vunpack.c.l.b16 %v477
  %v1694 = vunpack.c.l.b16 %v478
  %v1695 = vunpack.c.l.b16 %v479
  %v1696 = vunpack.c.l.b16 %v480
  %v1697 = vunpack.c.l.b16 %v481
  %v1698 = vunpack.c.l.b16 %v482
  %v1699 = vunpack.c.l.b16 %v483
  %v1700 = vunpack.c.l.b16 %v484
  %v1701 = vunpack.c.l.b16 %v485
  %v1702 = vunpack.c.l.b16 %v486
  %v1703 = vunpack.c.l.b16 %v487
  %v1704 = vunpack.c.l.b16 %v488
  %v1705 = vunpack.c.l.b16 %v489
  %v1706 = vunpack.c.l.b16 %v490
  %v1707 = vunpack.c.l.b16 %v491
  %v1708 = vunpack.c.l.b16 %v492
  %v1709 = vunpack.c.l.b16 %v493
  %v1710 = vunpack.c.l.b16 %v494
  %v1711 = vunpack.c.l.b16 %v495
  %v1712 = vunpack.c.l.b16 %v496
  %v1713 = vunpack.c.l.b16 %v497
  %v1714 = vunpack.c.l.b16 %v498
  %v1715 = vunpack.c.l.b16 %v499
  %v1716 = vunpack.c.l.b16 %v500
  %v1717 = vunpack.c.l.b16 %v501
  %v1718 = vunpack.c.l.b16 %v502
  %v1719 = vunpack.c.l.b16 %v503
  %v1720 = vunpack.c.l.b16 %v504
  %v1721 = vunpack.c.l.b16 %v505
  %v1722 = vunpack.c.l.b16 %v506
  %v1723 = vunpack.c.l.b16 %v507
  %v1724 = vunpack.c.l.b16 %v508
  %v1725 = vunpack.c.l.b16 %v509
  %v1726 = vunpack.c.l.b16 %v510
  %v1727 = vunpack.c.l.b16 %v511
  %v1728 = vunpack.c.l.b16 %v512
  %v1729 = vunpack.c.l.b16 %v513
  %v1730 = vunpack.c.l.b16 %v514
  %v1731 = vunpack.c.l.b16 %v515
  %v1732 = vunpack.c.l.b16 %v516
  %v1733 = vunpack.c.l.b16 %v517
  %v1734 = vunpack.c.l.b16 %v518
  %v1735 = vunpack.c.l.b16 %v519
  %v1736 = vunpack.c.l.b16 %v520
  %v1737 = vunpack.c.l.b16 %v521
  %v1738 = vunpack.c.l.b16 %v522
  %v1739 = vunpack.c.l.b16 %v523
  %v1740 = vunpack.c.l.b16 %v524
  %v1741 = vunpack.c.l.b16 %v525
  %v1742 = vunpack.c.l.b16 %v526
  %v1743 = vunpack.c.l.b16 %v527
  %v1744 = vunpack.c.l.b16 %v528
  %v1745 = vunpack.c.l.b16 %v529
  %v1746 = vunpack.c.l.b16 %v530
  %v1747 = vunpack.c.l.b16 %v531
  %v1748 = vunpack.c.l.b16 %v532
  %v1749 = vunpack.c.l.b16 %v533
  %v1750 = vunpack.c.l.b16 %v534
  %v1751 = vunpack.c.l.b16 %v535
  %v1752 = vunpack.c.l.b16 %v536
  %v1753 = vunpack.c.l.b16 %v537
  %v1754 = vunpack.c.l.b16 %v538
  %v1755 = vunpack.c.l.b16 %v539
  %v1756 = vunpack.c.l.b16 %v540
  %v1757 = vunpack.c.l.b16 %v541
  %v1758 = vunpack.c.l.b16 %v542
  %v1759 = vunpack.c.l.b16 %v543
  %v1760 = vunpack.c.l.b16 %v544
  %v1761 = vunpack.c.l.b16 %v545
  %v1762 = vunpack.c.l.b16 %v546
  %v1763 = vunpack.c.l.b16 %v547
  %v1764 = vunpack.c.l.b16 %v548
  %v1765 = vunpack.c.l.b16 %v549
  %v1766 = vunpack.c.l.b16 %v550
  %v1767 = vunpack.c.l.b16 %v551
  %v1768 = vunpack.c.l.b16 %v552
  %v1769 = vunpack.c.l.b16 %v553
  %v1770 = vunpack.c.l.b16 %v554
  %v1771 = vunpack.c.l.b16 %v555
  %v1772 = vunpack.c.l.b16 %v556
  %v1773 = vunpack.c.l.b16 %v557
  %v1774 = vunpack.c.l.b16 %v558
  %v1775 = vunpack.c.l.b16 %v559
  %v1776 = vunpack.c.l.b16 %v560
  %v1777 = vunpack.c.l.b16 %v561
  %v1778 = vunpack.c.l.b16 %v562
  %v1779 = vunpack.c.l.b16 %v563
  %v1780 = vunpack.c.l.b16 %v564
  %v1781 = vunpack.c.l.b16 %v565
  %v1782 = vunpack.c.l.b16 %v566
  %v1783 = vunpack.c.l.b16 %v567
  %v1784 = vunpack.c.l.b16 %v568
  %v1785 = vunpack.c.l.b16 %v569
  %v1786 = vunpack.c.l.b16 %v570
  %v1787 = vunpack.c.l.b16 %v571
  %v1788 = vunpack.c.l.b16 %v572
  %v1789 = vunpack.c.l.b16 %v573
  %v1790 = vunpack.c.l.b16 %v574
  %v1791 = vunpack.c.l.b16 %v575
  %v1792 = vunpack.c.l.b16 %v576
  %v1793 = vunpack.c.l.b16 %v577
  %v1794 = vunpack.c.l.b16 %v578
  %v1795 = vunpack.c.l.b16 %v579
  %v1796 = vunpack.c.l.b16 %v580
  %v1797 = vunpack.c.l.b16 %v581
  %v1798 = vunpack.c.l.b16 %v582
  %v1799 = vpack.c.b16 %v1278, %v1277
  %v1800 = vpack.c.b16 %v1280, %v1279
  %v1801 = vpack.c.b16 %v1282, %v1281
  %v1802 = vpack.c.b16 %v1284, %v1283
  %v1803 = vpack.c.b16 %v1286, %v1285
  %v1804 = vpack.c.b16 %v1288, %v1287
  %v1805 = vpack.c.b16 %v1290, %v1289
  %v1806 = vpack.c.b16 %v1292, %v1291
  %v1807 = vpack.c.b16 %v1294, %v1293
  %v1808 = vpack.c.b16 %v1296, %v1295
  %v1809 = vpack.c.b16 %v1298, %v1297
  %v1810 = vpack.c.b16 %v1300, %v1299
  %v1811 = vpack.c.b16 %v1302, %v1301
  %v1812 = vpack.c.b16 %v1304, %v1303
  %v1813 = vpack.c.b16 %v1306, %v1305
  %v1814 = vpack.c.b16 %v1308, %v1307
  %v1815 = vpack.c.b16 %v1310, %v1309
  %v1816 = vpack.c.b16 %v1312, %v1311
  %v1817 = vpack.c.b16 %v1314, %v1313
  %v1818 = vpack.c.b16 %v1316, %v1315
  %v1819 = vpack.c.b16 %v1318, %v1317
  %v1820 = vpack.c.b16 %v1320, %v1319
  %v1821 = vpack.c.b16 %v1322, %v1321
  %v1822 = vpack.c.b16 %v1324, %v1323
  %v1823 = vpack.c.b16 %v1326, %v1325
  %v1824 = vpack.c.b16 %v1328, %v1327
  %v1825 = vpack.c.b16 %v1330, %v1329
  %v1826 = vpack.c.b16 %v1332, %v1331
  %v1827 = vpack.c.b16 %v1334, %v1333
  %v1828 = vpack.c.b16 %v1336, %v1335
  %v1829 = vpack.c.b16 %v1338, %v1337
  %v1830 = vpack.c.b16 %v1340, %v1339
  %v1831 = vpack.c.b16 %v1342, %v1341
  %v1832 = vpack.c.b16 %v1344, %v1343
  %v1833 = vpack.c.b16 %v1346, %v1345
  %v1834 = vpack.c.b16 %v1348, %v1347
  %v1835 = vpack.c.b16 %v1350, %v1349
  %v1836 = vpack.c.b16 %v1352, %v1351
  %v1837 = vpack.c.b16 %v1354, %v1353
  %v1838 = vpack.c.b16 %v1356, %v1355
  %v1839 = vpack.c.b16 %v1358, %v1357
  %v1840 = vpack.c.b16 %v1360, %v1359
  %v1841 = vpack.c.b16 %v1362, %v1361
  %v1842 = vpack.c.b16 %v1364, %v1363
  %v1843 = vpack.c.b16 %v1366, %v1365
  %v1844 = vpack.c.b16 %v1368, %v1367
  %v1845 = vpack.c.b16 %v1370, %v1369
  %v1846 = vpack.c.b16 %v1372, %v1371
  %v1847 = vpack.c.b16 %v1374, %v1373
  %v1848 = vpack.c.b16 %v1376, %v1375
  %v1849 = vpack.c.b16 %v1378, %v1377
  %v1850 = vpack.c.b16 %v1380, %v1379
  %v1851 = vpack.c.b16 %v1382, %v1381
  %v1852 = vpack.c.b16 %v1384, %v1383
  %v1853 = vpack.c.b16 %v1386, %v1385
  %v1854 = vpack.c.b16 %v1388, %v1387
  %v1855 = vpack.c.b16 %v1390, %v1389
  %v1856 = vpack.c.b16 %v1392, %v1391
  %v1857 = vpack.c.b16 %v1394, %v1393
  %v1858 = vpack.c.b16 %v1396, %v1395
  %v1859 = vpack.c.b16 %v1398, %v1397
  %v1860 = vpack.c.b16 %v1400, %v1399
  %v1861 = vpack.c.b16 %v1402, %v1401
  %v1862 = vpack.c.b16 %v1404, %v1403
  %v1863 = vpack.c.b16 %v1406, %v1405
  %v1864 = vpack.c.b16 %v1408, %v1407
  %v1865 = vpack.c.b16 %v1410, %v1409
  %v1866 = vpack.c.b16 %v1412, %v1411
  %v1867 = vpack.c.b16 %v1414, %v1413
  %v1868 = vpack.c.b16 %v1416, %v1415
  %v1869 = vpack.c.b16 %v1418, %v1417
  %v1870 = vpack.c.b16 %v1420, %v1419
  %v1871 = vpack.c.b16 %v1422, %v1421
  %v1872 = vpack.c.b16 %v1424, %v1423
  %v1873 = vpack.c.b16 %v1426, %v1425
  %v1874 = vpack.c.b16 %v1428, %v1427
  %v1875 = vpack.c.b16 %v1430, %v1429
  %v1876 = vpack.c.b16 %v1432, %v1431
  %v1877 = vpack.c.b16 %v1434, %v1433
  %v1878 = vpack.c.b16 %v1436, %v1435
  %v1879 = vpack.c.b16 %v1438, %v1437
  %v1880 = vpack.c.b16 %v1440, %v1439
  %v1881 = vpack.c.b16 %v1442, %v1441
  %v1882 = vpack.c.b16 %v1444, %v1443
  %v1883 = vpack.c.b16 %v1446, %v1445
  %v1884 = vpack.c.b16 %v1448, %v1447
  %v1885 = vpack.c.b16 %v1450, %v1449
  %v1886 = vpack.c.b16 %v1452, %v1451
  %v1887 = vpack.c.b16 %v1454, %v1453
  %v1888 = vpack.c.b16 %v1456, %v1455
  %v1889 = vpack.c.b16 %v1458, %v1457
  %v1890 = vpack.c.b16 %v1460, %v1459
  %v1891 = vpack.c.b16 %v1462, %v1461
  %v1892 = vpack.c.b16 %v1464, %v1463
  %v1893 = vpack.c.b16 %v1466, %v1465
  %v1894 = vpack.c.b16 %v1468, %v1467
  %v1895 = vpack.c.b16 %v1470, %v1469
  %v1896 = vpack.c.b16 %v1472, %v1471
  %v1897 = vpack.c.b16 %v1474, %v1473
  %v1898 = vpack.c.b16 %v1476, %v1475
  %v1899 = vpack.c.b16 %v1478, %v1477
  %v1900 = vpack.c.b16 %v1480, %v1479
  %v1901 = vpack.c.b16 %v1482, %v1481
  %v1902 = vpack.c.b16 %v1484, %v1483
  %v1903 = vpack.c.b16 %v1486, %v1485
  %v1904 = vpack.c.b16 %v1488, %v1487
  %v1905 = vpack.c.b16 %v1490, %v1489
  %v1906 = vpack.c.b16 %v1492, %v1491
  %v1907 = vpack.c.b16 %v1494, %v1493
  %v1908 = vpack.c.b16 %v1496, %v1495
  %v1909 = vpack.c.b16 %v1498, %v1497
  %v1910 = vpack.c.b16 %v1500, %v1499
  %v1911 = vpack.c.b16 %v1502, %v1501
  %v1912 = vpack.c.b16 %v1504, %v1503
  %v1913 = vpack.c.b16 %v1506, %v1505
  %v1914 = vpack.c.b16 %v1508, %v1507
  %v1915 = vpack.c.b16 %v1510, %v1509
  %v1916 = vpack.c.b16 %v1512, %v1511
  %v1917 = vpack.c.b16 %v1514, %v1513
  %v1918 = vpack.c.b16 %v1516, %v1515
  %v1919 = vpack.c.b16 %v1518, %v1517
  %v1920 = vpack.c.b16 %v1520, %v1519
  %v1921 = vpack.c.b16 %v1522, %v1521
  %v1922 = vpack.c.b16 %v1524, %v1523
  %v1923 = vpack.c.b16 %v1526, %v1525
  %v1924 = vpack.c.b16 %v1528, %v1527
  %v1925 = vpack.c.b16 %v1530, %v1529
  %v1926 = vpack.c.b16 %v1532, %v1531
  %v1927 = vpack.c.b16 %v1534, %v1533
  %v1928 = vpack.c.b16 %v1536, %v1535
  %v1929 = vpack.c.b16 %v1538, %v1537
  %v1930 = vpack.c.b16 %v1540, %v1539
  %v1931 = vpack.c.b16 %v1542, %v1541
  %v1932 = vpack.c.b16 %v1544, %v1543
  %v1933 = vpack.c.b16 %v1546, %v1545
  %v1934 = vpack.c.b16 %v1548, %v1547
  %v1935 = vpack.c.b16 %v1550, %v1549
  %v1936 = vpack.c.b16 %v1552, %v1551
  %v1937 = vpack.c.b16 %v1554, %v1553
  %v1938 = vpack.c.b16 %v1556, %v1555
  %v1939 = vpack.c.b16 %v1558, %v1557
  %v1940 = vpack.c.b16 %v1560, %v1559
  %v1941 = vpack.c.b16 %v1562, %v1561
  %v1942 = vpack.c.b16 %v1564, %v1563
  %v1943 = vpack.c.b16 %v1566, %v1565
  %v1944 = vpack.c.b16 %v1568, %v1567
  %v1945 = vpack.c.b16 %v1570, %v1569
  %v1946 = vpack.c.b16 %v1572, %v1571
  %v1947 = vpack.c.b16 %v1574, %v1573
  %v1948 = vpack.c.b16 %v1576, %v1575
  %v1949 = vpack.c.b16 %v1578, %v1577
  %v1950 = vpack.c.b16 %v1580, %v1579
  %v1951 = vpack.c.b16 %v1582, %v1581
  %v1952 = vpack.c.b16 %v1584, %v1583
  %v1953 = vpack.c.b16 %v1586, %v1585
  %v1954 = vpack.c.b16 %v1588, %v1587
  %v1955 = vpack.c.b16 %v1590, %v1589
  %v1956 = vpack.c.b16 %v1592, %v1591
  %v1957 = vpack.c.b16 %v1594, %v1593
  %v1958 = vpack.c.b16 %v1596, %v1595
  %v1959 = vpack.c.b16 %v1598, %v1597
  %v1960 = vpack.c.b16 %v1600, %v1599
  %v1961 = vpack.c.b16 %v1602, %v1601
  %v1962 = vpack.c.b16 %v1604, %v1603
  %v1963 = vpack.c.b16 %v1606, %v1605
  %v1964 = vpack.c.b16 %v1608, %v1607
  %v1965 = vpack.c.b16 %v1610, %v1609
  %v1966 = vpack.c.b16 %v1612, %v1611
  %v1967 = vpack.c.b16 %v1614, %v1613
  %v1968 = vpack.c.b16 %v1616, %v1615
  %v1969 = vpack.c.b16 %v1618, %v1617
  %v1970 = vpack.c.b16 %v1620, %v1619
  %v1971 = vpack.c.b16 %v1622, %v1621
  %v1972 = vpack.c.b16 %v1624, %v1623
  %v1973 = vpack.c.b16 %v1626, %v1625
  %v1974 = vpack.c.b16 %v1628, %v1627
  %v1975 = vpack.c.b16 %v1630, %v1629
  %v1976 = vpack.c.b16 %v1632, %v1631
  %v1977 = vpack.c.b16 %v1634, %v1633
  %v1978 = vpack.c.b16 %v1636, %v1635
  %v1979 = vpack.c.b16 %v1638, %v1637
  %v1980 = vpack.c.b16 %v1640, %v1639
  %v1981 = vpack.c.b16 %v1642, %v1641
  %v1982 = vpack.c.b16 %v1644, %v1643
  %v1983 = vpack.c.b16 %v1646, %v1645
  %v1984 = vpack.c.b16 %v1648, %v1647
  %v1985 = vpack.c.b16 %v1650, %v1649
  %v1986 = vpack.c.b16 %v1652, %v1651
  %v1987 = vpack.c.b16 %v1654, %v1653
  %v1988 = vpack.c.b16 %v1656, %v1655
  %v1989 = vpack.c.b16 %v1658, %v1657
  %v1990 = vpack.c.b16 %v1660, %v1659
  %v1991 = vpack.c.b16 %v1662, %v1661
  %v1992 = vpack.c.b16 %v1664, %v1663
  %v1993 = vpack.c.b16 %v1666, %v1665
  %v1994 = vpack.c.b16 %v1668, %v1667
  %v1995 = vpack.c.b16 %v1670, %v1669
  %v1996 = vpack.c.b16 %v1672, %v1671
  %v1997 = vpack.c.b16 %v1674, %v1673
  %v1998 = vpack.c.b16 %v1676, %v1675
  %v1999 = vpack.c.b16 %v1678, %v1677
  %v2000 = vpack.c.b16 %v1680, %v1679
  %v2001 = vpack.c.b16 %v1682, %v1681
  %v2002 = vpack.c.b16 %v1684, %v1683
  %v2003 = vpack.c.b16 %v1686, %v1685
  %v2004 = vpack.c.b16 %v1688, %v1687
  %v2005 = vpack.c.b16 %v1690, %v1689
  %v2006 = vpack.c.b16 %v1692, %v1691
  %v2007 = vpack.c.b16 %v1694, %v1693
  %v2008 = vpack.c.b16 %v1696, %v1695
  %v2009 = vpack.c.b16 %v1698, %v1697
  %v2010 = vpack.c.b16 %v1700, %v1699
  %v2011 = vpack.c.b16 %v1702, %v1701
  %v2012 = vpack.c.b16 %v1704, %v1703
  %v2013 = vpack.c.b16 %v1706, %v1705
  %v2014 = vpack.c.b16 %v1708, %v1707
  %v2015 = vpack.c.b16 %v1710, %v1709
  %v2016 = vpack.c.b16 %v1712, %v1711
  %v2017 = vpack.c.b16 %v1714, %v1713
  %v2018 = vpack.c.b16 %v1716, %v1715
  %v2019 = vpack.c.b16 %v1718, %v1717
  %v2020 = vpack.c.b16 %v1720, %v1719
  %v2021 = vpack.c.b16 %v1722, %v1721
  %v2022 = vpack.c.b16 %v1724, %v1723
  %v2023 = vpack.c.b16 %v1726, %v1725
  %v2024 = vpack.c.b16 %v1728, %v1727
  %v2025 = vpack.c.b16 %v1730, %v1729
  %v2026 = vpack.c.b16 %v1732, %v1731
  %v2027 = vpack.c.b16 %v1734, %v1733
  %v2028 = vpack.c.b16 %v1736, %v1735
  %v2029 = vpack.c.b16 %v1738, %v1737
  %v2030 = vpack.c.b16 %v1740, %v1739
  %v2031 = vpack.c.b16 %v1742, %v1741
  %v2032 = vpack.c.b16 %v1744, %v1743
  %v2033 = vpack.c.b16 %v1746, %v1745
  %v2034 = vpack.c.b16 %v1748, %v1747
  %v2035 = vpack.c.b16 %v1750, %v1749
  %v2036 = vpack.c.b16 %v1752, %v1751
  %v2037 = vpack.c.b16 %v1754, %v1753
  %v2038 = vpack.c.b16 %v1756, %v1755
  %v2039 = vpack.c.b16 %v1758, %v1757
  %v2040 = vpack.c.b16 %v1760, %v1759
  %v2041 = vpack.c.b16 %v1762, %v1761
  %v2042 = vpack.c.b16 %v1764, %v1763
  %v2043 = vpack.c.b16 %v1766, %v1765
  %v2044 = vpack.c.b16 %v1768, %v1767
  %v2045 = vpack.c.b16 %v1770, %v1769
  %v2046 = vpack.c.b16 %v1772, %v1771
  %v2047 = vpack.c.b16 %v1774, %v1773
  %v2048 = vpack.c.b16 %v1776, %v1775
  %v2049 = vpack.c.b16 %v1778, %v1777
  %v2050 = vpack.c.b16 %v1780, %v1779
  %v2051 = vpack.c.b16 %v1782, %v1781
  %v2052 = vpack.c.b16 %v1784, %v1783
  %v2053 = vpack.c.b16 %v1786, %v1785
  %v2054 = vpack.c.b16 %v1788, %v1787
  %v2055 = vpack.c.b16 %v1790, %v1789
  %v2056 = vpack.c.b16 %v1792, %v1791
  %v2057 = vpack.c.b16 %v1794, %v1793
  %v2058 = vpack.c.b16 %v1796, %v1795
  %v2059 = vpack.c.b16 %v1798, %v1797
  %vm2321 = vcmask 654336
  %v2323 = vsel %vm2321, %v722, 0
  %2325 = vmatprep.subr.bf16.mxu0 0
  %2326 = vmatpush1.bf16.msra.mxu0 %v1799
  %2327 = vmatprep.subr.bf16.mxu0 0
  %2328 = vmatpush1.bf16.msra.mxu0 %v1800
  %2329 = vmatprep.subr.bf16.mxu0 0
  %2330 = vmatpush1.bf16.msra.mxu0 %v1801
  %2331 = vmatprep.subr.bf16.mxu0 0
  %2332 = vmatpush1.bf16.msra.mxu0 %v1802
  %2333 = vmatprep.subr.bf16.mxu0 0
  %2334 = vmatpush1.bf16.msra.mxu0 %v1803
  %2335 = vmatprep.subr.bf16.mxu0 0
  %2336 = vmatpush1.bf16.msra.mxu0 %v1804
  %2337 = vmatprep.subr.bf16.mxu0 0
  %2338 = vmatpush1.bf16.msra.mxu0 %v1805
  %2339 = vmatprep.subr.bf16.mxu0 0
  %2340 = vmatpush1.bf16.msra.mxu0 %v1806
  %2341 = vmatprep.subr.bf16.mxu0 0
  %2342 = vmatpush1.bf16.msra.mxu0 %v1807
  %2343 = vmatprep.subr.bf16.mxu0 0
  %2344 = vmatpush1.bf16.msra.mxu0 %v1808
  %2345 = vmatprep.subr.bf16.mxu0 0
  %2346 = vmatpush1.bf16.msra.mxu0 %v1809
  %2347 = vmatprep.subr.bf16.mxu0 0
  %2348 = vmatpush1.bf16.msra.mxu0 %v1810
  %2349 = vmatprep.subr.bf16.mxu0 0
  %2350 = vmatpush1.bf16.msra.mxu0 %v1811
  %2351 = vmatprep.subr.bf16.mxu0 0
  %2352 = vmatpush1.bf16.msra.mxu0 %v1812
  %2353 = vmatprep.subr.bf16.mxu0 0
  %2354 = vmatpush1.bf16.msra.mxu0 %v1813
  %2355 = vmatprep.subr.bf16.mxu0 0
  %2356 = vmatpush1.bf16.msra.mxu0 %v1814
  %2357 = vmatprep.mubr.bf16.mxu0 %v691
  %2358 = vmatmul.mubr.bf16.gmra.mrb[0].mxu0 %v690
  %v2359 = vpop.f32.mrb[0].mxu0
  %v2360 = vadd.f32 %v588, %v2359
  %v2361 = vpop.f32.mrb[0].mxu0
  %v2362 = vpop.f32.mrb[0].mxu0
  %v2363 = vadd.f32 %v588, %v2362
  %v2364 = vpop.f32.mrb[0].mxu0
  %2365 = vdwg.mxu0
  %2366 = vmatprep.subr.bf16.mxu0 0
  %2367 = vmatpush1.bf16.msra.mxu0 %v1815
  %2368 = vmatprep.subr.bf16.mxu0 0
  %2369 = vmatpush1.bf16.msra.mxu0 %v1816
  %2370 = vmatprep.subr.bf16.mxu0 0
  %2371 = vmatpush1.bf16.msra.mxu0 %v1817
  %2372 = vmatprep.subr.bf16.mxu0 0
  %2373 = vmatpush1.bf16.msra.mxu0 %v1818
  %2374 = vmatprep.subr.bf16.mxu0 0
  %2375 = vmatpush1.bf16.msra.mxu0 %v1819
  %2376 = vmatprep.subr.bf16.mxu0 0
  %2377 = vmatpush1.bf16.msra.mxu0 %v1820
  %2378 = vmatprep.subr.bf16.mxu0 0
  %2379 = vmatpush1.bf16.msra.mxu0 %v1821
  %2380 = vmatprep.subr.bf16.mxu0 0
  %2381 = vmatpush1.bf16.msra.mxu0 %v1822
  %2382 = vmatprep.subr.bf16.mxu0 0
  %2383 = vmatpush1.bf16.msra.mxu0 %v1823
  %2384 = vmatprep.subr.bf16.mxu0 0
  %2385 = vmatpush1.bf16.msra.mxu0 %v1824
  %2386 = vmatprep.subr.bf16.mxu0 0
  %2387 = vmatpush1.bf16.msra.mxu0 %v1825
  %2388 = vmatprep.subr.bf16.mxu0 0
  %2389 = vmatpush1.bf16.msra.mxu0 %v1826
  %2390 = vmatprep.subr.bf16.mxu0 0
  %2391 = vmatpush1.bf16.msra.mxu0 %v1827
  %2392 = vmatprep.subr.bf16.mxu0 0
  %2393 = vmatpush1.bf16.msra.mxu0 %v1828
  %2394 = vmatprep.subr.bf16.mxu0 0
  %2395 = vmatpush1.bf16.msra.mxu0 %v1829
  %2396 = vmatprep.subr.bf16.mxu0 0
  %2397 = vmatpush1.bf16.msra.mxu0 %v1830
  %2398 = vmatprep.mubr.bf16.mxu0 %v693
  %2399 = vmatmul.mubr.bf16.gmra.mrb[0].mxu0 %v692
  %v2400 = vpop.f32.mrb[0].mxu0
  %v2401 = vadd.f32 %v2360, %v2400
  %v2402 = vpop.f32.mrb[0].mxu0
  %v2403 = vpop.f32.mrb[0].mxu0
  %v2404 = vadd.f32 %v2363, %v2403
  %v2405 = vpop.f32.mrb[0].mxu0
  %2406 = vdwg.mxu0
  %2407 = vmatprep.subr.bf16.mxu0 0
  %2408 = vmatpush1.bf16.msra.mxu0 %v1831
  %2409 = vmatprep.subr.bf16.mxu0 0
  %2410 = vmatpush1.bf16.msra.mxu0 %v1832
  %2411 = vmatprep.subr.bf16.mxu0 0
  %2412 = vmatpush1.bf16.msra.mxu0 %v1833
  %2413 = vmatprep.subr.bf16.mxu0 0
  %2414 = vmatpush1.bf16.msra.mxu0 %v1834
  %2415 = vmatprep.subr.bf16.mxu0 0
  %2416 = vmatpush1.bf16.msra.mxu0 %v1835
  %2417 = vmatprep.subr.bf16.mxu0 0
  %2418 = vmatpush1.bf16.msra.mxu0 %v1836
  %2419 = vmatprep.subr.bf16.mxu0 0
  %2420 = vmatpush1.bf16.msra.mxu0 %v1837
  %2421 = vmatprep.subr.bf16.mxu0 0
  %2422 = vmatpush1.bf16.msra.mxu0 %v1838
  %2423 = vmatprep.subr.bf16.mxu0 0
  %2424 = vmatpush1.bf16.msra.mxu0 %v1839
  %2425 = vmatprep.subr.bf16.mxu0 0
  %2426 = vmatpush1.bf16.msra.mxu0 %v1840
  %2427 = vmatprep.subr.bf16.mxu0 0
  %2428 = vmatpush1.bf16.msra.mxu0 %v1841
  %2429 = vmatprep.subr.bf16.mxu0 0
  %2430 = vmatpush1.bf16.msra.mxu0 %v1842
  %2431 = vmatprep.subr.bf16.mxu0 0
  %2432 = vmatpush1.bf16.msra.mxu0 %v1843
  %2433 = vmatprep.subr.bf16.mxu0 0
  %2434 = vmatpush1.bf16.msra.mxu0 %v1844
  %2435 = vmatprep.subr.bf16.mxu0 0
  %2436 = vmatpush1.bf16.msra.mxu0 %v1845
  %2437 = vmatprep.subr.bf16.mxu0 0
  %2438 = vmatpush1.bf16.msra.mxu0 %v1846
  %2439 = vmatprep.mubr.bf16.mxu0 %v695
  %2440 = vmatmul.mubr.bf16.gmra.mrb[0].mxu0 %v694
  %v2441 = vpop.f32.mrb[0].mxu0
  %v2442 = vadd.f32 %v2401, %v2441
  %v2443 = vpop.f32.mrb[0].mxu0
  %v2444 = vpop.f32.mrb[0].mxu0
  %v2445 = vadd.f32 %v2404, %v2444
  %v2446 = vpop.f32.mrb[0].mxu0
  %2447 = vdwg.mxu0
  %2448 = vmatprep.subr.bf16.mxu0 0
  %2449 = vmatpush1.bf16.msra.mxu0 %v1847
  %2450 = vmatprep.subr.bf16.mxu0 0
  %2451 = vmatpush1.bf16.msra.mxu0 %v1848
  %2452 = vmatprep.subr.bf16.mxu0 0
  %2453 = vmatpush1.bf16.msra.mxu0 %v1849
  %2454 = vmatprep.subr.bf16.mxu0 0
  %2455 = vmatpush1.bf16.msra.mxu0 %v1850
  %2456 = vmatprep.subr.bf16.mxu0 0
  %2457 = vmatpush1.bf16.msra.mxu0 %v1851
  %2458 = vmatprep.subr.bf16.mxu0 0
  %2459 = vmatpush1.bf16.msra.mxu0 %v1852
  %2460 = vmatprep.subr.bf16.mxu0 0
  %2461 = vmatpush1.bf16.msra.mxu0 %v1853
  %2462 = vmatprep.subr.bf16.mxu0 0
  %2463 = vmatpush1.bf16.msra.mxu0 %v1854
  %2464 = vmatprep.subr.bf16.mxu0 0
  %2465 = vmatpush1.bf16.msra.mxu0 %v1855
  %2466 = vmatprep.subr.bf16.mxu0 0
  %2467 = vmatpush1.bf16.msra.mxu0 %v1856
  %2468 = vmatprep.subr.bf16.mxu0 0
  %2469 = vmatpush1.bf16.msra.mxu0 %v1857
  %2470 = vmatprep.subr.bf16.mxu0 0
  %2471 = vmatpush1.bf16.msra.mxu0 %v1858
  %2472 = vmatprep.subr.bf16.mxu0 0
  %2473 = vmatpush1.bf16.msra.mxu0 %v1859
  %2474 = vmatprep.subr.bf16.mxu0 0
  %2475 = vmatpush1.bf16.msra.mxu0 %v1860
  %2476 = vmatprep.subr.bf16.mxu0 0
  %2477 = vmatpush1.bf16.msra.mxu0 %v1861
  %2478 = vmatprep.subr.bf16.mxu0 0
  %2479 = vmatpush1.bf16.msra.mxu0 %v1862
  %2480 = vmatprep.mubr.bf16.mxu0 %v697
  %2481 = vmatmul.mubr.bf16.gmra.mrb[0].mxu0 %v696
  %v2482 = vpop.f32.mrb[0].mxu0
  %v2483 = vadd.f32 %v2442, %v2482
  %v2484 = vpop.f32.mrb[0].mxu0
  %v2485 = vpop.f32.mrb[0].mxu0
  %v2486 = vadd.f32 %v2445, %v2485
  %v2487 = vpop.f32.mrb[0].mxu0
  %2488 = vdwg.mxu0
  %2489 = vmatprep.subr.bf16.mxu0 0
  %2490 = vmatpush1.bf16.msra.mxu0 %v1863
  %2491 = vmatprep.subr.bf16.mxu0 0
  %2492 = vmatpush1.bf16.msra.mxu0 %v1864
  %2493 = vmatprep.subr.bf16.mxu0 0
  %2494 = vmatpush1.bf16.msra.mxu0 %v1865
  %2495 = vmatprep.subr.bf16.mxu0 0
  %2496 = vmatpush1.bf16.msra.mxu0 %v1866
  %2497 = vmatprep.subr.bf16.mxu0 0
  %2498 = vmatpush1.bf16.msra.mxu0 %v1867
  %2499 = vmatprep.subr.bf16.mxu0 0
  %2500 = vmatpush1.bf16.msra.mxu0 %v1868
  %2501 = vmatprep.subr.bf16.mxu0 0
  %2502 = vmatpush1.bf16.msra.mxu0 %v1869
  %2503 = vmatprep.subr.bf16.mxu0 0
  %2504 = vmatpush1.bf16.msra.mxu0 %v1870
  %2505 = vmatprep.subr.bf16.mxu0 0
  %2506 = vmatpush1.bf16.msra.mxu0 %v1871
  %2507 = vmatprep.subr.bf16.mxu0 0
  %2508 = vmatpush1.bf16.msra.mxu0 %v1872
  %2509 = vmatprep.subr.bf16.mxu0 0
  %2510 = vmatpush1.bf16.msra.mxu0 %v1873
  %2511 = vmatprep.subr.bf16.mxu0 0
  %2512 = vmatpush1.bf16.msra.mxu0 %v1874
  %2513 = vmatprep.subr.bf16.mxu0 0
  %2514 = vmatpush1.bf16.msra.mxu0 %v1875
  %2515 = vmatprep.subr.bf16.mxu0 0
  %2516 = vmatpush1.bf16.msra.mxu0 %v1876
  %2517 = vmatprep.subr.bf16.mxu0 0
  %2518 = vmatpush1.bf16.msra.mxu0 %v1877
  %2519 = vmatprep.subr.bf16.mxu0 0
  %2520 = vmatpush1.bf16.msra.mxu0 %v1878
  %2521 = vmatprep.mubr.bf16.mxu0 %v699
  %2522 = vmatmul.mubr.bf16.gmra.mrb[0].mxu0 %v698
  %v2523 = vpop.f32.mrb[0].mxu0
  %v2524 = vadd.f32 %v2483, %v2523
  %v2525 = vpop.f32.mrb[0].mxu0
  %v2526 = vpop.f32.mrb[0].mxu0
  %v2527 = vadd.f32 %v2486, %v2526
  %v2528 = vpop.f32.mrb[0].mxu0
  %2529 = vdwg.mxu0
  %2530 = vmatprep.subr.bf16.mxu0 0
  %2531 = vmatpush1.bf16.msra.mxu0 %v1879
  %2532 = vmatprep.subr.bf16.mxu0 0
  %2533 = vmatpush1.bf16.msra.mxu0 %v1880
  %2534 = vmatprep.subr.bf16.mxu0 0
  %2535 = vmatpush1.bf16.msra.mxu0 %v1881
  %2536 = vmatprep.subr.bf16.mxu0 0
  %2537 = vmatpush1.bf16.msra.mxu0 %v1882
  %2538 = vmatprep.subr.bf16.mxu0 0
  %2539 = vmatpush1.bf16.msra.mxu0 %v1883
  %2540 = vmatprep.subr.bf16.mxu0 0
  %2541 = vmatpush1.bf16.msra.mxu0 %v1884
  %2542 = vmatprep.subr.bf16.mxu0 0
  %2543 = vmatpush1.bf16.msra.mxu0 %v1885
  %2544 = vmatprep.subr.bf16.mxu0 0
  %2545 = vmatpush1.bf16.msra.mxu0 %v1886
  %2546 = vmatprep.subr.bf16.mxu0 0
  %2547 = vmatpush1.bf16.msra.mxu0 %v1887
  %2548 = vmatprep.subr.bf16.mxu0 0
  %2549 = vmatpush1.bf16.msra.mxu0 %v1888
  %2550 = vmatprep.subr.bf16.mxu0 0
  %2551 = vmatpush1.bf16.msra.mxu0 %v1889
  %2552 = vmatprep.subr.bf16.mxu0 0
  %2553 = vmatpush1.bf16.msra.mxu0 %v1890
  %2554 = vmatprep.subr.bf16.mxu0 0
  %2555 = vmatpush1.bf16.msra.mxu0 %v1891
  %2556 = vmatprep.subr.bf16.mxu0 0
  %2557 = vmatpush1.bf16.msra.mxu0 %v1892
  %2558 = vmatprep.subr.bf16.mxu0 0
  %2559 = vmatpush1.bf16.msra.mxu0 %v1893
  %2560 = vmatprep.subr.bf16.mxu0 0
  %2561 = vmatpush1.bf16.msra.mxu0 %v1894
  %2562 = vmatprep.mubr.bf16.mxu0 %v701
  %2563 = vmatmul.mubr.bf16.gmra.mrb[0].mxu0 %v700
  %v2564 = vpop.f32.mrb[0].mxu0
  %v2565 = vadd.f32 %v2524, %v2564
  %v2566 = vpop.f32.mrb[0].mxu0
  %v2567 = vpop.f32.mrb[0].mxu0
  %v2568 = vadd.f32 %v2527, %v2567
  %v2569 = vpop.f32.mrb[0].mxu0
  %2570 = vdwg.mxu0
  %2571 = vmatprep.subr.bf16.mxu0 0
  %2572 = vmatpush1.bf16.msra.mxu0 %v1895
  %2573 = vmatprep.subr.bf16.mxu0 0
  %2574 = vmatpush1.bf16.msra.mxu0 %v1896
  %2575 = vmatprep.subr.bf16.mxu0 0
  %2576 = vmatpush1.bf16.msra.mxu0 %v1897
  %2577 = vmatprep.subr.bf16.mxu0 0
  %2578 = vmatpush1.bf16.msra.mxu0 %v1898
  %2579 = vmatprep.subr.bf16.mxu0 0
  %2580 = vmatpush1.bf16.msra.mxu0 %v1899
  %2581 = vmatprep.subr.bf16.mxu0 0
  %2582 = vmatpush1.bf16.msra.mxu0 %v1900
  %2583 = vmatprep.subr.bf16.mxu0 0
  %2584 = vmatpush1.bf16.msra.mxu0 %v1901
  %2585 = vmatprep.subr.bf16.mxu0 0
  %2586 = vmatpush1.bf16.msra.mxu0 %v1902
  %2587 = vmatprep.subr.bf16.mxu0 0
  %2588 = vmatpush1.bf16.msra.mxu0 %v1903
  %2589 = vmatprep.subr.bf16.mxu0 0
  %2590 = vmatpush1.bf16.msra.mxu0 %v1904
  %2591 = vmatprep.subr.bf16.mxu0 0
  %2592 = vmatpush1.bf16.msra.mxu0 %v1905
  %2593 = vmatprep.subr.bf16.mxu0 0
  %2594 = vmatpush1.bf16.msra.mxu0 %v1906
  %2595 = vmatprep.subr.bf16.mxu0 0
  %2596 = vmatpush1.bf16.msra.mxu0 %v1907
  %2597 = vmatprep.subr.bf16.mxu0 0
  %2598 = vmatpush1.bf16.msra.mxu0 %v1908
  %2599 = vmatprep.subr.bf16.mxu0 0
  %2600 = vmatpush1.bf16.msra.mxu0 %v1909
  %2601 = vmatprep.subr.bf16.mxu0 0
  %2602 = vmatpush1.bf16.msra.mxu0 %v1910
  %2603 = vmatprep.mubr.bf16.mxu0 %v703
  %2604 = vmatmul.mubr.bf16.gmra.mrb[0].mxu0 %v702
  %v2605 = vpop.f32.mrb[0].mxu0
  %v2606 = vadd.f32 %v2565, %v2605
  %v2607 = vpop.f32.mrb[0].mxu0
  %v2608 = vpop.f32.mrb[0].mxu0
  %v2609 = vadd.f32 %v2568, %v2608
  %v2610 = vpop.f32.mrb[0].mxu0
  %2611 = vdwg.mxu0
  %2612 = vmatprep.subr.bf16.mxu0 0
  %2613 = vmatpush1.bf16.msra.mxu0 %v1911
  %2614 = vmatprep.subr.bf16.mxu0 0
  %2615 = vmatpush1.bf16.msra.mxu0 %v1912
  %2616 = vmatprep.subr.bf16.mxu0 0
  %2617 = vmatpush1.bf16.msra.mxu0 %v1913
  %2618 = vmatprep.subr.bf16.mxu0 0
  %2619 = vmatpush1.bf16.msra.mxu0 %v1914
  %2620 = vmatprep.subr.bf16.mxu0 0
  %2621 = vmatpush1.bf16.msra.mxu0 %v1915
  %2622 = vmatprep.subr.bf16.mxu0 0
  %2623 = vmatpush1.bf16.msra.mxu0 %v1916
  %2624 = vmatprep.subr.bf16.mxu0 0
  %2625 = vmatpush1.bf16.msra.mxu0 %v1917
  %2626 = vmatprep.subr.bf16.mxu0 0
  %2627 = vmatpush1.bf16.msra.mxu0 %v1918
  %2628 = vmatprep.subr.bf16.mxu0 0
  %2629 = vmatpush1.bf16.msra.mxu0 %v1919
  %2630 = vmatprep.subr.bf16.mxu0 0
  %2631 = vmatpush1.bf16.msra.mxu0 %v1920
  %2632 = vmatprep.subr.bf16.mxu0 0
  %2633 = vmatpush1.bf16.msra.mxu0 %v1921
  %2634 = vmatprep.subr.bf16.mxu0 0
  %2635 = vmatpush1.bf16.msra.mxu0 %v1922
  %2636 = vmatprep.subr.bf16.mxu0 0
  %2637 = vmatpush1.bf16.msra.mxu0 %v1923
  %2638 = vmatprep.subr.bf16.mxu0 0
  %2639 = vmatpush1.bf16.msra.mxu0 %v1924
  %2640 = vmatprep.subr.bf16.mxu0 0
  %2641 = vmatpush1.bf16.msra.mxu0 %v1925
  %2642 = vmatprep.subr.bf16.mxu0 0
  %2643 = vmatpush1.bf16.msra.mxu0 %v1926
  %2644 = vmatprep.mubr.bf16.mxu0 %v705
  %2645 = vmatmul.mubr.bf16.gmra.mrb[0].mxu0 %v704
  %v2646 = vpop.f32.mrb[0].mxu0
  %v2647 = vadd.f32 %v2606, %v2646
  %v2648 = vpop.f32.mrb[0].mxu0
  %v2649 = vpop.f32.mrb[0].mxu0
  %v2650 = vadd.f32 %v2609, %v2649
  %v2651 = vpop.f32.mrb[0].mxu0
  %2652 = vdwg.mxu0
  %2653 = vmatprep.subr.bf16.mxu0 0
  %2654 = vmatpush1.bf16.msra.mxu0 %v1927
  %2655 = vmatprep.subr.bf16.mxu0 0
  %2656 = vmatpush1.bf16.msra.mxu0 %v1928
  %2657 = vmatprep.subr.bf16.mxu0 0
  %2658 = vmatpush1.bf16.msra.mxu0 %v1929
  %2659 = vmatprep.subr.bf16.mxu0 0
  %2660 = vmatpush1.bf16.msra.mxu0 %v1930
  %2661 = vmatprep.subr.bf16.mxu0 0
  %2662 = vmatpush1.bf16.msra.mxu0 %v1931
  %2663 = vmatprep.subr.bf16.mxu0 0
  %2664 = vmatpush1.bf16.msra.mxu0 %v1932
  %2665 = vmatprep.subr.bf16.mxu0 0
  %2666 = vmatpush1.bf16.msra.mxu0 %v1933
  %2667 = vmatprep.subr.bf16.mxu0 0
  %2668 = vmatpush1.bf16.msra.mxu0 %v1934
  %2669 = vmatprep.subr.bf16.mxu0 0
  %2670 = vmatpush1.bf16.msra.mxu0 %v1935
  %2671 = vmatprep.subr.bf16.mxu0 0
  %2672 = vmatpush1.bf16.msra.mxu0 %v1936
  %2673 = vmatprep.subr.bf16.mxu0 0
  %2674 = vmatpush1.bf16.msra.mxu0 %v1937
  %2675 = vmatprep.subr.bf16.mxu0 0
  %2676 = vmatpush1.bf16.msra.mxu0 %v1938
  %2677 = vmatprep.subr.bf16.mxu0 0
  %2678 = vmatpush1.bf16.msra.mxu0 %v1939
  %2679 = vmatprep.subr.bf16.mxu0 0
  %2680 = vmatpush1.bf16.msra.mxu0 %v1940
  %2681 = vmatprep.subr.bf16.mxu0 0
  %2682 = vmatpush1.bf16.msra.mxu0 %v1941
  %2683 = vmatprep.subr.bf16.mxu0 0
  %2684 = vmatpush1.bf16.msra.mxu0 %v1942
  %2685 = vmatprep.mubr.bf16.mxu0 %v707
  %2686 = vmatmul.mubr.bf16.gmra.mrb[0].mxu0 %v706
  %v2687 = vpop.f32.mrb[0].mxu0
  %v2688 = vadd.f32 %v2647, %v2687
  %v2689 = vpop.f32.mrb[0].mxu0
  %v2690 = vpop.f32.mrb[0].mxu0
  %v2691 = vadd.f32 %v2650, %v2690
  %v2692 = vpop.f32.mrb[0].mxu0
  %2693 = vdwg.mxu0
  %2694 = vmatprep.subr.bf16.mxu0 0
  %2695 = vmatpush1.bf16.msra.mxu0 %v1943
  %2696 = vmatprep.subr.bf16.mxu0 0
  %2697 = vmatpush1.bf16.msra.mxu0 %v1944
  %2698 = vmatprep.subr.bf16.mxu0 0
  %2699 = vmatpush1.bf16.msra.mxu0 %v1945
  %2700 = vmatprep.subr.bf16.mxu0 0
  %2701 = vmatpush1.bf16.msra.mxu0 %v1946
  %2702 = vmatprep.subr.bf16.mxu0 0
  %2703 = vmatpush1.bf16.msra.mxu0 %v1947
  %2704 = vmatprep.subr.bf16.mxu0 0
  %2705 = vmatpush1.bf16.msra.mxu0 %v1948
  %2706 = vmatprep.subr.bf16.mxu0 0
  %2707 = vmatpush1.bf16.msra.mxu0 %v1949
  %2708 = vmatprep.subr.bf16.mxu0 0
  %2709 = vmatpush1.bf16.msra.mxu0 %v1950
  %2710 = vmatprep.subr.bf16.mxu0 0
  %2711 = vmatpush1.bf16.msra.mxu0 %v1951
  %2712 = vmatprep.subr.bf16.mxu0 0
  %2713 = vmatpush1.bf16.msra.mxu0 %v1952
  %2714 = vmatprep.subr.bf16.mxu0 0
  %2715 = vmatpush1.bf16.msra.mxu0 %v1953
  %2716 = vmatprep.subr.bf16.mxu0 0
  %2717 = vmatpush1.bf16.msra.mxu0 %v1954
  %2718 = vmatprep.subr.bf16.mxu0 0
  %2719 = vmatpush1.bf16.msra.mxu0 %v1955
  %2720 = vmatprep.subr.bf16.mxu0 0
  %2721 = vmatpush1.bf16.msra.mxu0 %v1956
  %2722 = vmatprep.subr.bf16.mxu0 0
  %2723 = vmatpush1.bf16.msra.mxu0 %v1957
  %2724 = vmatprep.subr.bf16.mxu0 0
  %2725 = vmatpush1.bf16.msra.mxu0 %v1958
  %2726 = vmatprep.mubr.bf16.mxu0 %v709
  %2727 = vmatmul.mubr.bf16.gmra.mrb[0].mxu0 %v708
  %v2728 = vpop.f32.mrb[0].mxu0
  %v2729 = vadd.f32 %v2688, %v2728
  %v2730 = vpop.f32.mrb[0].mxu0
  %v2731 = vpop.f32.mrb[0].mxu0
  %v2732 = vadd.f32 %v2691, %v2731
  %v2733 = vpop.f32.mrb[0].mxu0
  %2734 = vdwg.mxu0
  %2735 = vmatprep.subr.bf16.mxu0 0
  %2736 = vmatpush1.bf16.msra.mxu0 %v1959
  %2737 = vmatprep.subr.bf16.mxu0 0
  %2738 = vmatpush1.bf16.msra.mxu0 %v1960
  %2739 = vmatprep.subr.bf16.mxu0 0
  %2740 = vmatpush1.bf16.msra.mxu0 %v1961
  %2741 = vmatprep.subr.bf16.mxu0 0
  %2742 = vmatpush1.bf16.msra.mxu0 %v1962
  %2743 = vmatprep.subr.bf16.mxu0 0
  %2744 = vmatpush1.bf16.msra.mxu0 %v1963
  %2745 = vmatprep.subr.bf16.mxu0 0
  %2746 = vmatpush1.bf16.msra.mxu0 %v1964
  %2747 = vmatprep.subr.bf16.mxu0 0
  %2748 = vmatpush1.bf16.msra.mxu0 %v1965
  %2749 = vmatprep.subr.bf16.mxu0 0
  %2750 = vmatpush1.bf16.msra.mxu0 %v1966
  %2751 = vmatprep.subr.bf16.mxu0 0
  %2752 = vmatpush1.bf16.msra.mxu0 %v1967
  %2753 = vmatprep.subr.bf16.mxu0 0
  %2754 = vmatpush1.bf16.msra.mxu0 %v1968
  %2755 = vmatprep.subr.bf16.mxu0 0
  %2756 = vmatpush1.bf16.msra.mxu0 %v1969
  %2757 = vmatprep.subr.bf16.mxu0 0
  %2758 = vmatpush1.bf16.msra.mxu0 %v1970
  %2759 = vmatprep.subr.bf16.mxu0 0
  %2760 = vmatpush1.bf16.msra.mxu0 %v1971
  %2761 = vmatprep.subr.bf16.mxu0 0
  %2762 = vmatpush1.bf16.msra.mxu0 %v1972
  %2763 = vmatprep.subr.bf16.mxu0 0
  %2764 = vmatpush1.bf16.msra.mxu0 %v1973
  %2765 = vmatprep.subr.bf16.mxu0 0
  %2766 = vmatpush1.bf16.msra.mxu0 %v1974
  %2767 = vmatprep.mubr.bf16.mxu0 %v711
  %2768 = vmatmul.mubr.bf16.gmra.mrb[0].mxu0 %v710
  %v2769 = vpop.f32.mrb[0].mxu0
  %v2770 = vadd.f32 %v2729, %v2769
  %v2771 = vpop.f32.mrb[0].mxu0
  %v2772 = vpop.f32.mrb[0].mxu0
  %v2773 = vadd.f32 %v2732, %v2772
  %v2774 = vpop.f32.mrb[0].mxu0
  %2775 = vdwg.mxu0
  %2776 = vmatprep.subr.bf16.mxu0 0
  %2777 = vmatpush1.bf16.msra.mxu0 %v1975
  %2778 = vmatprep.subr.bf16.mxu0 0
  %2779 = vmatpush1.bf16.msra.mxu0 %v1976
  %2780 = vmatprep.subr.bf16.mxu0 0
  %2781 = vmatpush1.bf16.msra.mxu0 %v1977
  %2782 = vmatprep.subr.bf16.mxu0 0
  %2783 = vmatpush1.bf16.msra.mxu0 %v1978
  %2784 = vmatprep.subr.bf16.mxu0 0
  %2785 = vmatpush1.bf16.msra.mxu0 %v1979
  %2786 = vmatprep.subr.bf16.mxu0 0
  %2787 = vmatpush1.bf16.msra.mxu0 %v1980
  %2788 = vmatprep.subr.bf16.mxu0 0
  %2789 = vmatpush1.bf16.msra.mxu0 %v1981
  %2790 = vmatprep.subr.bf16.mxu0 0
  %2791 = vmatpush1.bf16.msra.mxu0 %v1982
  %2792 = vmatprep.subr.bf16.mxu0 0
  %2793 = vmatpush1.bf16.msra.mxu0 %v1983
  %2794 = vmatprep.subr.bf16.mxu0 0
  %2795 = vmatpush1.bf16.msra.mxu0 %v1984
  %2796 = vmatprep.subr.bf16.mxu0 0
  %2797 = vmatpush1.bf16.msra.mxu0 %v1985
  %2798 = vmatprep.subr.bf16.mxu0 0
  %2799 = vmatpush1.bf16.msra.mxu0 %v1986
  %2800 = vmatprep.subr.bf16.mxu0 0
  %2801 = vmatpush1.bf16.msra.mxu0 %v1987
  %2802 = vmatprep.subr.bf16.mxu0 0
  %2803 = vmatpush1.bf16.msra.mxu0 %v1988
  %2804 = vmatprep.subr.bf16.mxu0 0
  %2805 = vmatpush1.bf16.msra.mxu0 %v1989
  %2806 = vmatprep.subr.bf16.mxu0 0
  %2807 = vmatpush1.bf16.msra.mxu0 %v1990
  %2808 = vmatprep.mubr.bf16.mxu0 %v713
  %2809 = vmatmul.mubr.bf16.gmra.mrb[0].mxu0 %v712
  %v2810 = vpop.f32.mrb[0].mxu0
  %v2811 = vadd.f32 %v2770, %v2810
  %v2812 = vpop.f32.mrb[0].mxu0
  %v2813 = vpop.f32.mrb[0].mxu0
  %v2814 = vadd.f32 %v2773, %v2813
  %v2815 = vpop.f32.mrb[0].mxu0
  %2816 = vdwg.mxu0
  %2817 = vmatprep.subr.bf16.mxu0 0
  %2818 = vmatpush1.bf16.msra.mxu0 %v1991
  %2819 = vmatprep.subr.bf16.mxu0 0
  %2820 = vmatpush1.bf16.msra.mxu0 %v1992
  %2821 = vmatprep.subr.bf16.mxu0 0
  %2822 = vmatpush1.bf16.msra.mxu0 %v1993
  %2823 = vmatprep.subr.bf16.mxu0 0
  %2824 = vmatpush1.bf16.msra.mxu0 %v1994
  %2825 = vmatprep.subr.bf16.mxu0 0
  %2826 = vmatpush1.bf16.msra.mxu0 %v1995
  %2827 = vmatprep.subr.bf16.mxu0 0
  %2828 = vmatpush1.bf16.msra.mxu0 %v1996
  %2829 = vmatprep.subr.bf16.mxu0 0
  %2830 = vmatpush1.bf16.msra.mxu0 %v1997
  %2831 = vmatprep.subr.bf16.mxu0 0
  %2832 = vmatpush1.bf16.msra.mxu0 %v1998
  %2833 = vmatprep.subr.bf16.mxu0 0
  %2834 = vmatpush1.bf16.msra.mxu0 %v1999
  %2835 = vmatprep.subr.bf16.mxu0 0
  %2836 = vmatpush1.bf16.msra.mxu0 %v2000
  %2837 = vmatprep.subr.bf16.mxu0 0
  %2838 = vmatpush1.bf16.msra.mxu0 %v2001
  %2839 = vmatprep.subr.bf16.mxu0 0
  %2840 = vmatpush1.bf16.msra.mxu0 %v2002
  %2841 = vmatprep.subr.bf16.mxu0 0
  %2842 = vmatpush1.bf16.msra.mxu0 %v2003
  %2843 = vmatprep.subr.bf16.mxu0 0
  %2844 = vmatpush1.bf16.msra.mxu0 %v2004
  %2845 = vmatprep.subr.bf16.mxu0 0
  %2846 = vmatpush1.bf16.msra.mxu0 %v2005
  %2847 = vmatprep.subr.bf16.mxu0 0
  %2848 = vmatpush1.bf16.msra.mxu0 %v2006
  %2849 = vmatprep.mubr.bf16.mxu0 %v715
  %2850 = vmatmul.mubr.bf16.gmra.mrb[0].mxu0 %v714
  %v2851 = vpop.f32.mrb[0].mxu0
  %v2852 = vadd.f32 %v2811, %v2851
  %v2853 = vpop.f32.mrb[0].mxu0
  %v2854 = vpop.f32.mrb[0].mxu0
  %v2855 = vadd.f32 %v2814, %v2854
  %v2856 = vpop.f32.mrb[0].mxu0
  %2857 = vdwg.mxu0
  %2858 = vmatprep.subr.bf16.mxu0 0
  %2859 = vmatpush1.bf16.msra.mxu0 %v2007
  %2860 = vmatprep.subr.bf16.mxu0 0
  %2861 = vmatpush1.bf16.msra.mxu0 %v2008
  %2862 = vmatprep.subr.bf16.mxu0 0
  %2863 = vmatpush1.bf16.msra.mxu0 %v2009
  %2864 = vmatprep.subr.bf16.mxu0 0
  %2865 = vmatpush1.bf16.msra.mxu0 %v2010
  %2866 = vmatprep.subr.bf16.mxu0 0
  %2867 = vmatpush1.bf16.msra.mxu0 %v2011
  %2868 = vmatprep.subr.bf16.mxu0 0
  %2869 = vmatpush1.bf16.msra.mxu0 %v2012
  %2870 = vmatprep.subr.bf16.mxu0 0
  %2871 = vmatpush1.bf16.msra.mxu0 %v2013
  %2872 = vmatprep.subr.bf16.mxu0 0
  %2873 = vmatpush1.bf16.msra.mxu0 %v2014
  %2874 = vmatprep.subr.bf16.mxu0 0
  %2875 = vmatpush1.bf16.msra.mxu0 %v2015
  %2876 = vmatprep.subr.bf16.mxu0 0
  %2877 = vmatpush1.bf16.msra.mxu0 %v2016
  %2878 = vmatprep.subr.bf16.mxu0 0
  %2879 = vmatpush1.bf16.msra.mxu0 %v2017
  %2880 = vmatprep.subr.bf16.mxu0 0
  %2881 = vmatpush1.bf16.msra.mxu0 %v2018
  %2882 = vmatprep.subr.bf16.mxu0 0
  %2883 = vmatpush1.bf16.msra.mxu0 %v2019
  %2884 = vmatprep.subr.bf16.mxu0 0
  %2885 = vmatpush1.bf16.msra.mxu0 %v2020
  %2886 = vmatprep.subr.bf16.mxu0 0
  %2887 = vmatpush1.bf16.msra.mxu0 %v2021
  %2888 = vmatprep.subr.bf16.mxu0 0
  %2889 = vmatpush1.bf16.msra.mxu0 %v2022
  %2890 = vmatprep.mubr.bf16.mxu0 %v717
  %2891 = vmatmul.mubr.bf16.gmra.mrb[0].mxu0 %v716
  %v2892 = vpop.f32.mrb[0].mxu0
  %v2893 = vadd.f32 %v2852, %v2892
  %v2894 = vpop.f32.mrb[0].mxu0
  %v2895 = vpop.f32.mrb[0].mxu0
  %v2896 = vadd.f32 %v2855, %v2895
  %v2897 = vpop.f32.mrb[0].mxu0
  %2898 = vdwg.mxu0
  %2899 = vmatprep.subr.bf16.mxu0 0
  %2900 = vmatpush1.bf16.msra.mxu0 %v2023
  %2901 = vmatprep.subr.bf16.mxu0 0
  %2902 = vmatpush1.bf16.msra.mxu0 %v2024
  %2903 = vmatprep.subr.bf16.mxu0 0
  %2904 = vmatpush1.bf16.msra.mxu0 %v2025
  %2905 = vmatprep.subr.bf16.mxu0 0
  %2906 = vmatpush1.bf16.msra.mxu0 %v2026
  %2907 = vmatprep.subr.bf16.mxu0 0
  %2908 = vmatpush1.bf16.msra.mxu0 %v2027
  %2909 = vmatprep.subr.bf16.mxu0 0
  %2910 = vmatpush1.bf16.msra.mxu0 %v2028
  %2911 = vmatprep.subr.bf16.mxu0 0
  %2912 = vmatpush1.bf16.msra.mxu0 %v2029
  %2913 = vmatprep.subr.bf16.mxu0 0
  %2914 = vmatpush1.bf16.msra.mxu0 %v2030
  %2915 = vmatprep.subr.bf16.mxu0 0
  %2916 = vmatpush1.bf16.msra.mxu0 %v2031
  %2917 = vmatprep.subr.bf16.mxu0 0
  %2918 = vmatpush1.bf16.msra.mxu0 %v2032
  %2919 = vmatprep.subr.bf16.mxu0 0
  %2920 = vmatpush1.bf16.msra.mxu0 %v2033
  %2921 = vmatprep.subr.bf16.mxu0 0
  %2922 = vmatpush1.bf16.msra.mxu0 %v2034
  %2923 = vmatprep.subr.bf16.mxu0 0
  %2924 = vmatpush1.bf16.msra.mxu0 %v2035
  %2925 = vmatprep.subr.bf16.mxu0 0
  %2926 = vmatpush1.bf16.msra.mxu0 %v2036
  %2927 = vmatprep.subr.bf16.mxu0 0
  %2928 = vmatpush1.bf16.msra.mxu0 %v2037
  %2929 = vmatprep.subr.bf16.mxu0 0
  %2930 = vmatpush1.bf16.msra.mxu0 %v2038
  %2931 = vmatprep.mubr.bf16.mxu0 %v719
  %2932 = vmatmul.mubr.bf16.gmra.mrb[0].mxu0 %v718
  %v2933 = vpop.f32.mrb[0].mxu0
  %v2934 = vadd.f32 %v2893, %v2933
  %v2935 = vpop.f32.mrb[0].mxu0
  %v2936 = vpop.f32.mrb[0].mxu0
  %v2937 = vadd.f32 %v2896, %v2936
  %v2938 = vpop.f32.mrb[0].mxu0
  %2939 = vdwg.mxu0
  %2940 = vmatprep.subr.bf16.mxu0 0
  %2941 = vmatpush1.bf16.msra.mxu0 %v2039
  %2942 = vmatprep.subr.bf16.mxu0 0
  %2943 = vmatpush1.bf16.msra.mxu0 %v2040
  %2944 = vmatprep.subr.bf16.mxu0 0
  %2945 = vmatpush1.bf16.msra.mxu0 %v2041
  %2946 = vmatprep.subr.bf16.mxu0 0
  %2947 = vmatpush1.bf16.msra.mxu0 %v2042
  %2948 = vmatprep.subr.bf16.mxu0 0
  %2949 = vmatpush1.bf16.msra.mxu0 %v2043
  %2950 = vmatprep.subr.bf16.mxu0 0
  %2951 = vmatpush1.bf16.msra.mxu0 %v2044
  %2952 = vmatprep.subr.bf16.mxu0 0
  %2953 = vmatpush1.bf16.msra.mxu0 %v2045
  %2954 = vmatprep.subr.bf16.mxu0 0
  %2955 = vmatpush1.bf16.msra.mxu0 %v2046
  %2956 = vmatprep.subr.bf16.mxu0 0
  %2957 = vmatpush1.bf16.msra.mxu0 %v2047
  %2958 = vmatprep.subr.bf16.mxu0 0
  %2959 = vmatpush1.bf16.msra.mxu0 %v2048
  %2960 = vmatprep.subr.bf16.mxu0 0
  %2961 = vmatpush1.bf16.msra.mxu0 %v2049
  %2962 = vmatprep.subr.bf16.mxu0 0
  %2963 = vmatpush1.bf16.msra.mxu0 %v2050
  %2964 = vmatprep.subr.bf16.mxu0 0
  %2965 = vmatpush1.bf16.msra.mxu0 %v2051
  %2966 = vmatprep.subr.bf16.mxu0 0
  %2967 = vmatpush1.bf16.msra.mxu0 %v2052
  %2968 = vmatprep.subr.bf16.mxu0 0
  %2969 = vmatpush1.bf16.msra.mxu0 %v2053
  %2970 = vmatprep.subr.bf16.mxu0 0
  %2971 = vmatpush1.bf16.msra.mxu0 %v2054
  %2972 = vmatprep.mubr.bf16.mxu0 %v721
  %2973 = vmatmul.mubr.bf16.gmra.mrb[0].mxu0 %v720
  %v2974 = vpop.f32.mrb[0].mxu0
  %v2975 = vadd.f32 %v2934, %v2974
  %v2976 = vpop.f32.mrb[0].mxu0
  %v2977 = vpop.f32.mrb[0].mxu0
  %v2978 = vadd.f32 %v2937, %v2977
  %v2979 = vpop.f32.mrb[0].mxu0
  %2980 = vdwg.mxu0
  %2981 = vmatprep.subr.bf16.mxu0 0
  %2982 = vmatpush1.bf16.msra.mxu0 %v2055
  %2983 = vmatprep.subr.bf16.mxu0 0
  %2984 = vmatpush1.bf16.msra.mxu0 %v2056
  %2985 = vmatprep.subr.bf16.mxu0 0
  %2986 = vmatpush1.bf16.msra.mxu0 %v2057
  %2987 = vmatprep.subr.bf16.mxu0 0
  %2988 = vmatpush1.bf16.msra.mxu0 %v2058
  %2989 = vmatprep.subr.bf16.mxu0 0
  %2990 = vmatpush1.bf16.msra.mxu0 %v2059
  %2991 = vmatprep.subr.bf16.mxu0 0
  %2992 = vmatpush1.bf16.msra.mxu0 0
  %2993 = vmatprep.subr.bf16.mxu0 0
  %2994 = vmatpush1.bf16.msra.mxu0 0
  %2995 = vmatprep.subr.bf16.mxu0 0
  %2996 = vmatpush1.bf16.msra.mxu0 0
  %2997 = vmatprep.subr.bf16.mxu0 0
  %2998 = vmatpush1.bf16.msra.mxu0 0
  %2999 = vmatprep.subr.bf16.mxu0 0
  %3000 = vmatpush1.bf16.msra.mxu0 0
  %3001 = vmatprep.subr.bf16.mxu0 0
  %3002 = vmatpush1.bf16.msra.mxu0 0
  %3003 = vmatprep.subr.bf16.mxu0 0
  %3004 = vmatpush1.bf16.msra.mxu0 0
  %3005 = vmatprep.subr.bf16.mxu0 0
  %3006 = vmatpush1.bf16.msra.mxu0 0
  %3007 = vmatprep.subr.bf16.mxu0 0
  %3008 = vmatpush1.bf16.msra.mxu0 0
  %3009 = vmatprep.subr.bf16.mxu0 0
  %3010 = vmatpush1.bf16.msra.mxu0 0
  %3011 = vmatprep.subr.bf16.mxu0 0
  %3012 = vmatpush1.bf16.msra.mxu0 0
  %3013 = vmatprep.mubr.bf16.mxu0 0
  %3014 = vmatmul.mubr.bf16.gmra.mrb[0].mxu0 %v2323
  %v3015 = vpop.f32.mrb[0].mxu0
  %v3016 = vadd.f32 %v2975, %v3015
  %v3017 = vpop.f32.mrb[0].mxu0
  %v3018 = vpop.f32.mrb[0].mxu0
  %v3019 = vadd.f32 %v2978, %v3018
  %v3020 = vpop.f32.mrb[0].mxu0
  %3021 = vdwg.mxu0
  %v3022 = vmax.f32 %v3016, 0.0
  %v3023 = vmax.f32 %v3019, 0.0
  %v3024 = vld [vmem:[%s4] sm:$0xff]
  %v3025 = vld [vmem:[%s4 + $0x8] sm:$0xff]
  %v3026 = vld [vmem:[%s4 + $0x10] sm:$0xff]
  %v3027 = vld [vmem:[%s4 + $0x18] sm:$0xff]
  %v3028 = vld [vmem:[%s5] sm:$0x1]
  %v3030 = vlaneseq
  %v3031 = vshrl.u32 %v3030, 7
  %v3032 = vsub.s32 0, %v3031
  %v3033 = vrot.slane %v3028, %v3032
  %vm3035 = vcmask 261120
  %v3037 = vsel %vm3035, %v3022, 0
  %v3040 = vsel %vm3035, %v3023, 0
  %3042 = vmatprep.subr.mxu0 0.0
  %3043 = vmatpush1.msra.mxu0 %v3024
  %3044 = vmatprep.subr.mxu0 0.0
  %3045 = vmatpush1.msra.mxu0 %v3025
  %3046 = vmatprep.subr.mxu0 0.0
  %3047 = vmatpush1.msra.mxu0 %v3026
  %3048 = vmatprep.subr.mxu0 0.0
  %3049 = vmatpush1.msra.mxu0 %v3027
  %3050 = vmatprep.subr.mxu0 0.0
  %3051 = vmatpush1.msra.mxu0 0.0
  %3052 = vmatprep.subr.mxu0 0.0
  %3053 = vmatpush1.msra.mxu0 0.0
  %3054 = vmatprep.subr.mxu0 0.0
  %3055 = vmatpush1.msra.mxu0 0.0
  %3056 = vmatprep.subr.mxu0 0.0
  %3057 = vmatpush1.msra.mxu0 0.0
  %3058 = vmatprep.subr.mxu0 0.0
  %3059 = vmatpush1.msra.mxu0 0.0
  %3060 = vmatprep.subr.mxu0 0.0
  %3061 = vmatpush1.msra.mxu0 0.0
  %3062 = vmatprep.subr.mxu0 0.0
  %3063 = vmatpush1.msra.mxu0 0.0
  %3064 = vmatprep.subr.mxu0 0.0
  %3065 = vmatpush1.msra.mxu0 0.0
  %3066 = vmatprep.subr.mxu0 0.0
  %3067 = vmatpush1.msra.mxu0 0.0
  %3068 = vmatprep.subr.mxu0 0.0
  %3069 = vmatpush1.msra.mxu0 0.0
  %3070 = vmatprep.subr.mxu0 0.0
  %3071 = vmatpush1.msra.mxu0 0.0
  %3072 = vmatprep.subr.mxu0 0.0
  %3073 = vmatpush1.msra.mxu0 0.0
  %3074 = vmatprep.subr.mxu0 0.0
  %3075 = vmatpush1.msra.mxu0 0.0
  %3076 = vmatprep.subr.mxu0 0.0
  %3077 = vmatpush1.msra.mxu0 0.0
  %3078 = vmatprep.subr.mxu0 0.0
  %3079 = vmatpush1.msra.mxu0 0.0
  %3080 = vmatprep.subr.mxu0 0.0
  %3081 = vmatpush1.msra.mxu0 0.0
  %3082 = vmatprep.subr.mxu0 0.0
  %3083 = vmatpush1.msra.mxu0 0.0
  %3084 = vmatprep.subr.mxu0 0.0
  %3085 = vmatpush1.msra.mxu0 0.0
  %3086 = vmatprep.subr.mxu0 0.0
  %3087 = vmatpush1.msra.mxu0 0.0
  %3088 = vmatprep.subr.mxu0 0.0
  %3089 = vmatpush1.msra.mxu0 0.0
  %3090 = vmatprep.subr.mxu0 0.0
  %3091 = vmatpush1.msra.mxu0 0.0
  %3092 = vmatprep.subr.mxu0 0.0
  %3093 = vmatpush1.msra.mxu0 0.0
  %3094 = vmatprep.subr.mxu0 0.0
  %3095 = vmatpush1.msra.mxu0 0.0
  %3096 = vmatprep.subr.mxu0 0.0
  %3097 = vmatpush1.msra.mxu0 0.0
  %3098 = vmatprep.subr.mxu0 0.0
  %3099 = vmatpush1.msra.mxu0 0.0
  %3100 = vmatprep.subr.mxu0 0.0
  %3101 = vmatpush1.msra.mxu0 0.0
  %3102 = vmatprep.subr.mxu0 0.0
  %3103 = vmatpush1.msra.mxu0 0.0
  %3104 = vmatprep.subr.mxu0 0.0
  %3105 = vmatpush1.msra.mxu0 0.0
  %3106 = vmatprep.mubr.f32.mxu0 0.0
  %3107 = vmatmul.mubr.f32.gmra.mrb[0].mxu0 %v3037
  %v3108 = vpop.f32.mrb[0].mxu0
  %v3109 = vadd.f32 %v3033, %v3108
  %v3110 = vpop.f32.mrb[0].mxu0
  %3111 = vmatprep.mubr.f32.mxu0 0.0
  %3112 = vmatmul.mubr.f32.gmra.mrb[0].mxu0 %v3040
  %v3113 = vpop.f32.mrb[0].mxu0
  %v3114 = vadd.f32 %v3033, %v3113
  %v3115 = vpop.f32.mrb[0].mxu0
  %3116 = vdwg.mxu0
  %v3117 = vmax.f32 %v3109, 0.0
  %v3118 = vmax.f32 %v3114, 0.0
  %v3119 = vld [vmem:[%s6] sm:$0x1]
  %v3121 = vlaneseq
  %v3122 = vshrl.u32 %v3121, 7
  %v3123 = vsub.s32 0, %v3122
  %v3124 = vrot.slane %v3119, %v3123
  %v3126 = vmul.f32 %v3117, %v3124
  %v3127 = vmul.f32 %v3118, %v3124
  %v3128 = vsel %vm3035, %v3126, 0.0
  %3129 = vadd.xlane.f32.xlu0 %v3128
  %v3130 = vpop.xlane.xlu0 %3129
  %v3131 = vsel %vm3035, %v3127, 0.0
  %3132 = vadd.xlane.f32.xlu0 %v3131
  %v3133 = vpop.xlane.xlu0 %3132
  %v3134 = vld [vmem:[%s1] sm:$0xff]
  %v3135 = vld [vmem:[%s1 + $0x8] sm:$0xff]
  %v3136 = vadd.f32 %v3134, %v3130
  %v3137 = vadd.f32 %v3135, %v3133
  %v3138 = vxor.u32 %v3136, 2147483648
  %v3139 = vxor.u32 %v3137, 2147483648
  %v3140 = vmul.f32 %v3138, 1.442695
  %v3141 = vpow.pop %v3140
  %v3142 = vmul.f32 %v3139, 1.442695
  %v3143 = vpow.pop %v3142
  %v3144 = vadd.f32 %v3141, 1.0
  %v3145 = vadd.f32 %v3143, 1.0
  %v3146 = vrcp.pop %v3144
  %v3147 = vmul.f32 1.0, %v3146
  %v3148 = vrcp.pop %v3145
  %v3149 = vmul.f32 1.0, %v3148
  %v3150 = vmul.f32 %v3147, 2.0
  %v3151 = vmul.f32 %v3149, 2.0
  %vm3152 = vcmask 7168
  %3153 = vst.msk [vmem:[%s7] sm:$0xff] %vm3152, %v3150
  %3154 = vst.msk [vmem:[%s7 + $0x8] sm:$0xff] %vm3152, %v3151
  // Predicated region
  $region30: #{tpu_custom_call.1} parent=0 // pred_check
    _
  $region31: #{tpu_custom_call.1} parent=0 // pred_check_branch
    %3156 = sbr.rel (0) target = $region33
  $region32: #{tpu_custom_call.1} parent=0 // pred_region
    _
  $region33: #{tpu_custom_call.1} parent=0 // pred_fallthru
    _
  // Predicated region
  $region34: #{tpu_custom_call.1} parent=0 // pred_check
    _
  $region35: #{tpu_custom_call.1} parent=0 // pred_check_branch
    %3158 = sbr.rel (0) target = $region37
  $region36: #{tpu_custom_call.1} parent=0 // pred_region
    _
  $region37: #{tpu_custom_call.1} parent=0 // pred_fallthru
    _

</llo_original>
